<compile_context>
chip_gen: v5e
topology: v5e:2x2
jax: 0.10.0
libtpu: 0.0.40
codegen_flags: <defaults>
</compile_context>

<pallas_src>
import functools
import math

import jax
import jax.numpy as jnp
import numpy as np
from jax import lax
from jax.experimental import pallas as pl
from jax.experimental.pallas import tpu as pltpu

_SCALE_CLAMP = math.log(1000.0 / 16.0)  # detectron2 Box2BoxTransform default


def _group_stride(num_anchors):
    """Sublane-aligned stride between the [logits|dx|dy|dw|dh] column groups."""
    return max(8, ((num_anchors + 7) // 8) * 8)


def _cell_anchor_dims(sizes=(32.0,), aspect_ratios=(0.5, 1.0, 2.0)):
    """Per-anchor (width, height) of the detectron2 cell anchors (static)."""
    ws, hs = [], []
    for size in sizes:
        area = size * size
        for ar in aspect_ratios:
            w = math.sqrt(area / ar)
            h = ar * w
            ws.append(w)
            hs.append(h)
    return tuple(ws), tuple(hs)


# ----------------------------------------------------------------------------
# Fused Pallas kernel: RPN head (im2col conv3x3 + ReLU + fused 1x1) + box decode
# One grid step = (image n, row-tile t).
# ----------------------------------------------------------------------------
def _fused_rpn_kernel(xm_ref, xh_ref, wc_ref, bc_ref, wf_ref, bf_ref,
                      scores_ref, boxes_ref, slab_ref, col_ref, *,
                      num_anchors, group, anchor_w, anchor_h, stride,
                      img_h, img_w):
    TH = xm_ref.shape[1]          # output rows in this tile
    Wp = xm_ref.shape[2]          # padded width
    C = xm_ref.shape[3]
    W = Wp - 2
    A = num_anchors
    G = group
    THW = TH * W

    # ---- (TH+2, Wp, C) halo slab, bf16 end to end (review: drop f32 casts) ---
    slab_ref[0:TH] = xm_ref[0]
    slab_ref[TH:TH + 2] = xh_ref[0]

    # ---- im2col: build (THW, 9C) once, single K=9C MXU matmul ----------------
    # NOTE(review): tap column offsets tap*C are lane-aligned when C % 128 == 0
    # (real RPN has C=256); with the toy C=16 these are masked partial stores.
    # TODO(synk): realize the kx shifts with pltpu.roll over the full padded
    # width (XLU slot) -- needs an output-compaction story for the 2 junk
    # columns per row, so it is left as-is here.
    for tap in range(9):
        ky, kx = divmod(tap, 3)
        col_ref[:, tap * C:(tap + 1) * C] = (
            slab_ref[ky:ky + TH, kx:kx + W, :].reshape(THW, C))

    # conv3x3 + bias + ReLU (bf16 MXU operands, f32 accumulation).
    t = jnp.dot(col_ref[...], wc_ref[...], preferred_element_type=jnp.float32)
    t = jnp.maximum(t + bc_ref[...], 0.0).astype(jnp.bfloat16)

    # Fused objectness + anchor-delta 1x1 convs: ONE full-128-lane MXU matmul.
    # Columns: [logits(A)@0 | dx(A)@G | dy(A)@2G | dw(A)@3G | dh(A)@4G | 0-pad].
    out = jnp.dot(t, wf_ref[...], preferred_element_type=jnp.float32) + bf_ref[...]

    # One XLU transpose so everything downstream is lane-dense: spatial (THW,
    # a multiple of 128) on lanes, anchors/coords on sublanes.
    outT = out.T                                            # (Coutp, THW)

    # Objectness logits, bf16 writeback (only feed top-k).
    scores_ref[0, :, :] = outT[0:A, :].astype(jnp.bfloat16)

    dx = outT[G:G + A, :]
    dy = outT[2 * G:2 * G + A, :]
    dw = jnp.minimum(outT[3 * G:3 * G + A, :], _SCALE_CLAMP)
    dh = jnp.minimum(outT[4 * G:4 * G + A, :], _SCALE_CLAMP)

    # ---- anchors generated in-kernel from iota (no anchor HBM stream) --------
    m = lax.broadcasted_iota(jnp.int32, (A, THW), 1).astype(jnp.float32)
    a_row = lax.broadcasted_iota(jnp.int32, (A, THW), 0)
    # div-free row/col split (avoid vector integer div/mod on the VPU).
    row_l = jnp.floor((m + 0.5) * (1.0 / W))                # local row (exact)
    col_f = m - row_l * W                                   # column   (exact)
    row_f = row_l + (pl.program_id(1) * TH).astype(jnp.float32)
    acx = col_f * stride
    acy = row_f * stride
    aw = jnp.full((A, THW), anchor_w[A - 1], jnp.float32)
    ah = jnp.full((A, THW), anchor_h[A - 1], jnp.float32)
    for a in range(A - 1):
        aw = jnp.where(a_row == a, anchor_w[a], aw)
        ah = jnp.where(a_row == a, anchor_h[a], ah)

    # Box2BoxTransform.apply_deltas (weights (1,1,1,1)) + clip, lane-dense.
    pcx = dx * aw + acx
    pcy = dy * ah + acy
    pw = jnp.exp(dw) * aw
    ph = jnp.exp(dh) * ah

    x1 = jnp.clip(pcx - 0.5 * pw, 0.0, img_w)
    y1 = jnp.clip(pcy - 0.5 * ph, 0.0, img_h)
    x2 = jnp.clip(pcx + 0.5 * pw, 0.0, img_w)
    y2 = jnp.clip(pcy + 0.5 * ph, 0.0, img_h)
    # Single full-block store; rows ordered coordinate-major (k*A + a).
    boxes_ref[0, :, :] = jnp.concatenate([x1, y1, x2, y2], axis=0)


def fused_rpn_proposals(xp_bf16, wc_cm, bc, wf, bf, *, num_anchors, anchor_w,
                        anchor_h, stride, image_size, tile_h,
                        vmem_limit_bytes=48 * 1024 * 1024):
    """xp_bf16: padded NHWC bf16 (N, H+2, W+2, C).

    Returns:
      scores (N, A, HW)  bf16  -- objectness logits, spatial on lanes.
      boxes  (N, 4A, HW) f32   -- decoded & clipped boxes, row index k*A + a
                                  (k in x1,y1,x2,y2), spatial on lanes.
    image_size is (img_h, img_w) in pixels (detectron2 convention).
    """
    N, Hp, Wp, C = xp_bf16.shape
    H, W = Hp - 2, Wp - 2
    A = num_anchors
    TH = tile_h
    assert H % TH == 0 and TH % 2 == 0, "tile_h must be an even divisor of H"
    THW = TH * W
    assert THW % 128 == 0, "tile spatial extent (tile_h*W) must be a multiple of 128"
    nT = H // TH
    HW = H * W
    Cmid = wc_cm.shape[1]
    Coutp = wf.shape[1]
    G = _group_stride(A)
    assert Coutp % 128 == 0 and Coutp >= 5 * G
    img_h, img_w = float(image_size[0]), float(image_size[1])

    kernel = functools.partial(
        _fused_rpn_kernel, num_anchors=A, group=G,
        anchor_w=tuple(float(w) for w in anchor_w),
        anchor_h=tuple(float(h) for h in anchor_h),
        stride=float(stride), img_h=img_h, img_w=img_w)

    half_th = TH // 2

    # TODO(synk): pipeline_mode=pl.Buffered(1) on the four constant weight/bias
    # BlockSpecs would drop their second VMEM buffer (mostly matters on v7x's
    # 64 MiB VMEM); left at the default double-buffering for portability.
    scores, boxes = pl.pallas_call(
        kernel,
        out_shape=(jax.ShapeDtypeStruct((N, A, HW), jnp.bfloat16),
                   jax.ShapeDtypeStruct((N, 4 * A, HW), jnp.float32)),
        grid_spec=pltpu.PrefetchScalarGridSpec(
            num_scalar_prefetch=0,
            grid=(N, nT),
            in_specs=[
                # TH main rows of the padded input for this tile ...
                pl.BlockSpec((1, TH, Wp, C), lambda n, t: (n, t, 0, 0)),
                # ... plus the 2-row halo immediately below (same array).
                pl.BlockSpec((1, 2, Wp, C),
                             lambda n, t: (n, (t + 1) * half_th, 0, 0)),
                pl.BlockSpec((9 * C, Cmid), lambda n, t: (0, 0)),
                pl.BlockSpec((1, Cmid), lambda n, t: (0, 0)),
                pl.BlockSpec((Cmid, Coutp), lambda n, t: (0, 0)),
                pl.BlockSpec((1, Coutp), lambda n, t: (0, 0)),
            ],
            out_specs=[
                pl.BlockSpec((1, A, THW), lambda n, t: (n, 0, t)),
                pl.BlockSpec((1, 4 * A, THW), lambda n, t: (n, 0, t)),
            ],
            scratch_shapes=[
                pltpu.VMEM((TH + 2, Wp, C), jnp.bfloat16),   # halo slab (bf16)
                pltpu.VMEM((THW, 9 * C), jnp.bfloat16),      # im2col matrix
            ]),
        compiler_params=pltpu.CompilerParams(
            dimension_semantics=("parallel", "parallel"),
            # <=48 MiB is safe on v7x (64 MiB physical VMEM); on v5e/v6e
            # (128 MiB) this can be raised to ~96 MiB together with larger
            # tiles (target_rows 2048-4096) for fewer grid steps.
            vmem_limit_bytes=vmem_limit_bytes),
    )(xp_bf16, xp_bf16, wc_cm, bc, wf, bf)
    return scores, boxes


# ----------------------------------------------------------------------------
# Plain-JAX glue: anchors (reference only), weight packing, full forward
# ----------------------------------------------------------------------------
def generate_anchors(H, W, stride=16.0, sizes=(32.0,), aspect_ratios=(0.5, 1.0, 2.0)):
    """Reference anchors (HW, A, 4) in detectron2 XYXY layout."""
    ws, hs = _cell_anchor_dims(sizes, aspect_ratios)
    cell = jnp.asarray([[-w / 2.0, -h / 2.0, w / 2.0, h / 2.0]
                        for w, h in zip(ws, hs)], jnp.float32)       # (A, 4)
    sx = jnp.arange(W, dtype=jnp.float32) * stride
    sy = jnp.arange(H, dtype=jnp.float32) * stride
    gy, gx = jnp.meshgrid(sy, sx, indexing="ij")
    shifts = jnp.stack([gx, gy, gx, gy], axis=-1).reshape(-1, 1, 4)  # (HW,1,4)
    return shifts + cell[None]                                       # (HW, A, 4)


def prepare_params(wc_oihw, bc, wo_oihw, bo, wd_oihw, bd, num_anchors):
    """Pack detectron2-layout weights into the fused-kernel layout."""
    A = num_anchors
    Cmid, Cin = wc_oihw.shape[0], wc_oihw.shape[1]
    G = _group_stride(A)

    # 3x3 conv weight -> im2col layout (tap*Cin + cin, Cout), tap = ky*3 + kx.
    wc_cm = jnp.transpose(wc_oihw, (2, 3, 1, 0)).reshape(9 * Cin, Cmid)
    wc_cm = wc_cm.astype(jnp.bfloat16)
    bc2 = bc.reshape(1, Cmid).astype(jnp.float32)

    wo = wo_oihw[:, :, 0, 0].T                      # (Cmid, A)
    wd = wd_oihw[:, :, 0, 0].T                      # (Cmid, 4A), col = a*4 + k

    # Fused 1x1 weight: Coutp padded to a multiple of 128 (full-lane MXU pass,
    # lane-dense output); groups at sublane-aligned offsets g*G,
    # g in {logits, dx, dy, dw, dh}.  Zero columns cost nothing on the MXU.
    coutp = max(128, ((5 * G + 127) // 128) * 128)
    wf = jnp.zeros((Cmid, coutp), jnp.float32)
    bf = jnp.zeros((coutp,), jnp.float32)
    wf = wf.at[:, 0:A].set(wo)
    bf = bf.at[0:A].set(bo)
    for k in range(4):                               # dx, dy, dw, dh
        src = np.arange(A) * 4 + k                   # detectron2 channel a*4+k
        wf = wf.at[:, (k + 1) * G:(k + 1) * G + A].set(wd[:, src])
        bf = bf.at[(k + 1) * G:(k + 1) * G + A].set(bd[src])
    wf = wf.astype(jnp.bfloat16)
    bf = bf.reshape(1, coutp).astype(jnp.float32)
    return wc_cm, bc2, wf, bf


def _pick_tile_h(H, W, batch, target_rows=2048):
    """Largest even row tile dividing H with lane-aligned (TH*W % 128 == 0)
    blocks under the row budget; keeps >=2 grid steps for batch-1 inputs so
    both v7x TensorCores get work."""
    cands = [th for th in range(2, H + 1, 2)
             if H % th == 0 and (th * W) % 128 == 0 and th * W <= target_rows]
    if not cands:
        # TODO(synk): pad H/W for ragged feature maps instead of bailing out.
        raise ValueError(f"no lane-aligned row tile for H={H}, W={W}")
    if batch * (H // cands[-1]) < 2:
        smaller = [th for th in cands if H // th >= 2]
        if smaller:
            return smaller[-1]
    return cands[-1]


def rpn_forward(x_nchw, params, num_anchors, image_size, pre_nms_topk=50,
                tile_h=None, stride=16.0, sizes=(32.0,),
                aspect_ratios=(0.5, 1.0, 2.0)):
    """Inference-mode RPN.forward.  Returns ((boxes, scores), losses).

    image_size is (img_h, img_w) -- detectron2 convention: x clipped to img_w,
    y clipped to img_h.
    """
    wc_cm, bc, wf, bf = params
    N, C, H, W = x_nchw.shape
    A = num_anchors
    HW = H * W
    if tile_h is None:
        tile_h = _pick_tile_h(H, W, N)

    # NCHW -> NHWC, bf16 cast and 1-pixel pad in a single XLA pass.
    # TODO(synk): fold the 1-pixel halo padding into the kernel's edge tiles so
    # this extra HBM pass over the feature map disappears entirely.
    x_nhwc = jnp.transpose(x_nchw, (0, 2, 3, 1)).astype(jnp.bfloat16)
    xp = jnp.pad(x_nhwc, ((0, 0), (1, 1), (1, 1), (0, 0)))

    anchor_w, anchor_h = _cell_anchor_dims(sizes, aspect_ratios)

    scores, boxes = fused_rpn_proposals(
        xp, wc_cm, bc, wf, bf, num_anchors=A, anchor_w=anchor_w,
        anchor_h=anchor_h, stride=stride, image_size=image_size, tile_h=tile_h)

    # pre-NMS top-k over all A*H*W proposals (flat index = a*HW + hw; only the
    # (box, score) pairing matters, not detectron2's flat ordering).  Only the
    # k winners are gathered into (k, 4) box layout.
    obj = scores.astype(jnp.float32).reshape(N, A * HW)
    k = min(pre_nms_topk, A * HW)
    top_scores, top_idx = lax.top_k(obj, k)
    a_idx = top_idx // HW
    hw_idx = top_idx % HW
    boxes4 = boxes.reshape(N, 4, A, HW)
    top_boxes = jax.vmap(lambda b, a, hw: b[:, a, hw].T)(boxes4, a_idx, hw_idx)

    # TODO(synk): per-image NMS (find_top_rpn_proposals), min-box-size filtering
    # and the training-time anchor matching / RPN losses are data-dependent,
    # dynamic-length ops with no clean Pallas equivalent; the inference path
    # returns pre-NMS top-k proposals instead.
    losses = {}
    return (top_boxes, top_scores), losses


# ----------------------------------------------------------------------------
# Pure-JAX reference (NCHW convs + detectron2 decode) for correctness checking
# ----------------------------------------------------------------------------
def ref_rpn_outputs(x_nchw, wc_oihw, bc, wo_oihw, bo, wd_oihw, bd,
                    anchors_xy, image_size):
    dn = ("NCHW", "OIHW", "NCHW")
    t = lax.conv_general_dilated(x_nchw, wc_oihw, (1, 1), "SAME",
                                 dimension_numbers=dn)
    t = jnp.maximum(t + bc[None, :, None, None], 0.0)
    logits = lax.conv_general_dilated(t, wo_oihw, (1, 1), "SAME",
                                      dimension_numbers=dn) + bo[None, :, None, None]
    deltas = lax.conv_general_dilated(t, wd_oihw, (1, 1), "SAME",
                                      dimension_numbers=dn) + bd[None, :, None, None]
    N, A, H, W = logits.shape
    HW = H * W
    scores = jnp.transpose(logits, (0, 2, 3, 1)).reshape(N, HW, A)
    d = jnp.transpose(deltas, (0, 2, 3, 1)).reshape(N, HW, A, 4)  # chan = a*4 + k

    aw = anchors_xy[..., 2] - anchors_xy[..., 0]
    ah = anchors_xy[..., 3] - anchors_xy[..., 1]
    acx = anchors_xy[..., 0] + 0.5 * aw
    acy = anchors_xy[..., 1] + 0.5 * ah
    dx, dy = d[..., 0], d[..., 1]
    dw = jnp.minimum(d[..., 2], _SCALE_CLAMP)
    dh = jnp.minimum(d[..., 3], _SCALE_CLAMP)
    pcx = dx * aw + acx
    pcy = dy * ah + acy
    pw = jnp.exp(dw) * aw
    ph = jnp.exp(dh) * ah
    img_h, img_w = image_size
    x1 = jnp.clip(pcx - 0.5 * pw, 0.0, img_w)
    y1 = jnp.clip(pcy - 0.5 * ph, 0.0, img_h)
    x2 = jnp.clip(pcx + 0.5 * pw, 0.0, img_w)
    y2 = jnp.clip(pcy + 0.5 * ph, 0.0, img_h)
    boxes = jnp.stack([x1, y1, x2, y2], axis=-2)       # (N, HW, 4, A)
    return scores, boxes.reshape(N, HW, 4 * A)          # box col = k*A + a


if __name__ == "__main__":
    key = jax.random.PRNGKey(0)
    kx, k1, k2, k3, k4, k5, k6 = jax.random.split(key, 7)

    N, C, H, W = 2, 16, 16, 16    # small synthetic feature map (NCHW)
    A = 3                          # anchors per cell (3 aspect ratios)

    x = jax.random.normal(kx, (N, C, H, W), jnp.float32)

    # detectron2 StandardRPNHead init: N(0, 0.01) weights; small random biases.
    wc_oihw = 0.01 * jax.random.normal(k1, (C, C, 3, 3), jnp.float32)
    wo_oihw = 0.01 * jax.random.normal(k2, (A, C, 1, 1), jnp.float32)
    wd_oihw = 0.01 * jax.random.normal(k3, (4 * A, C, 1, 1), jnp.float32)
    bc = 0.01 * jax.random.normal(k4, (C,), jnp.float32)
    bo = 0.01 * jax.random.normal(k5, (A,), jnp.float32)
    bd = 0.01 * jax.random.normal(k6, (4 * A,), jnp.float32)

    params = prepare_params(wc_oihw, bc, wo_oihw, bo, wd_oihw, bd, A)
    image_size = (float(H * 16), float(W * 16))   # (img_h, img_w)

    (prop_boxes, prop_scores), losses = rpn_forward(
        x, params, num_anchors=A, image_size=image_size,
        pre_nms_topk=50, tile_h=8)
    jax.block_until_ready(prop_boxes)
    jax.block_until_ready(prop_scores)

    # Correctness: fused Pallas kernel (head + decode + clip, incl. the delta
    # channel reordering and in-kernel anchors) vs a pure-JAX lax.conv +
    # detectron2-decode reference.
    anchor_w, anchor_h = _cell_anchor_dims()
    anchors_xy = generate_anchors(H, W)
    xp = jnp.pad(jnp.transpose(x, (0, 2, 3, 1)).astype(jnp.bfloat16),
                 ((0, 0), (1, 1), (1, 1), (0, 0)))
    scores_k, boxes_k = fused_rpn_proposals(
        xp, *params, num_anchors=A, anchor_w=anchor_w, anchor_h=anchor_h,
        stride=16.0, image_size=image_size, tile_h=8)
    scores_r, boxes_r = ref_rpn_outputs(
        x, wc_oihw, bc, wo_oihw, bo, wd_oihw, bd, anchors_xy, image_size)

    sk = np.transpose(np.asarray(scores_k.astype(jnp.float32)), (0, 2, 1))
    bk = np.transpose(np.asarray(boxes_k), (0, 2, 1))
    np.testing.assert_allclose(sk, np.asarray(scores_r), rtol=2e-2, atol=2e-3)
    np.testing.assert_allclose(bk, np.asarray(boxes_r), rtol=1e-2, atol=1e-1)

    assert prop_boxes.shape == (N, 50, 4) and prop_scores.shape == (N, 50)
    print("KERNEL_OK")
</pallas_src>

<mosaic_0001>
module attributes {stable_mosaic.version = 11 : i64} {
  func.func @_fused_rpn_kernel(%arg0: i32, %arg1: i32, %arg2: memref<1x8x18x16xbf16, #tpu.memory_space<vmem>>, %arg3: memref<1x2x18x16xbf16, #tpu.memory_space<vmem>>, %arg4: memref<144x16xbf16, #tpu.memory_space<vmem>>, %arg5: memref<1x16xf32, #tpu.memory_space<vmem>>, %arg6: memref<16x128xbf16, #tpu.memory_space<vmem>>, %arg7: memref<1x128xf32, #tpu.memory_space<vmem>>, %arg8: memref<1x3x128xbf16, #tpu.memory_space<vmem>>, %arg9: memref<1x12x128xf32, #tpu.memory_space<vmem>>, %arg10: memref<10x18x16xbf16, #tpu.memory_space<vmem>>, %arg11: memref<128x144xbf16, #tpu.memory_space<vmem>>) attributes {dimension_semantics = [#tpu.dimension_semantics<parallel>, #tpu.dimension_semantics<parallel>], iteration_bounds = array<i64: 2, 2>, scalar_prefetch = 0 : i64, scratch_operands = 2 : i64, tpu.core_type = #tpu.core_type<tc>, window_params = [{transform_indices = @transform_0, window_bounds = array<i64: 1, 8, 18, 16>}, {transform_indices = @transform_1, window_bounds = array<i64: 1, 2, 18, 16>}, {pipeline_mode = #tpu.pipeline_mode<synchronous>, transform_indices = @transform_2, window_bounds = array<i64: 144, 16>}, {pipeline_mode = #tpu.pipeline_mode<synchronous>, transform_indices = @transform_3, window_bounds = array<i64: 1, 16>}, {pipeline_mode = #tpu.pipeline_mode<synchronous>, transform_indices = @transform_4, window_bounds = array<i64: 16, 128>}, {pipeline_mode = #tpu.pipeline_mode<synchronous>, transform_indices = @transform_5, window_bounds = array<i64: 1, 128>}, {transform_indices = @transform_6, window_bounds = array<i64: 1, 3, 128>}, {transform_indices = @transform_7, window_bounds = array<i64: 1, 12, 128>}]} {
    %c0 = arith.constant 0 : index
    %c0_0 = arith.constant 0 : index
    %c0_1 = arith.constant 0 : index
    %c0_2 = arith.constant 0 : index
    %0 = vector.load %arg2[%c0, %c0_0, %c0_1, %c0_2] : memref<1x8x18x16xbf16, #tpu.memory_space<vmem>>, vector<1x8x18x16xbf16>
    %1 = vector.shape_cast %0 : vector<1x8x18x16xbf16> to vector<8x18x16xbf16>
    %c0_3 = arith.constant 0 : index
    %c0_4 = arith.constant 0 : index
    %c0_5 = arith.constant 0 : index
    %2 = vector.load %arg10[%c0_3, %c0_4, %c0_5] : memref<10x18x16xbf16, #tpu.memory_space<vmem>>, vector<8x18x16xbf16>
    tpu.vector_store %arg10[%c0_3, %c0_4, %c0_5], %1 {strides = array<i32>} : memref<10x18x16xbf16, #tpu.memory_space<vmem>>, vector<8x18x16xbf16>,
    %c0_6 = arith.constant 0 : index
    %c0_7 = arith.constant 0 : index
    %c0_8 = arith.constant 0 : index
    %c0_9 = arith.constant 0 : index
    %3 = vector.load %arg3[%c0_6, %c0_7, %c0_8, %c0_9] : memref<1x2x18x16xbf16, #tpu.memory_space<vmem>>, vector<1x2x18x16xbf16>
    %4 = vector.shape_cast %3 : vector<1x2x18x16xbf16> to vector<2x18x16xbf16>
    %c8 = arith.constant 8 : index
    %c0_10 = arith.constant 0 : index
    %c0_11 = arith.constant 0 : index
    %5 = vector.load %arg10[%c8, %c0_10, %c0_11] : memref<10x18x16xbf16, #tpu.memory_space<vmem>>, vector<2x18x16xbf16>
    tpu.vector_store %arg10[%c8, %c0_10, %c0_11], %4 {strides = array<i32>} : memref<10x18x16xbf16, #tpu.memory_space<vmem>>, vector<2x18x16xbf16>,
    %c0_12 = arith.constant 0 : index
    %c0_13 = arith.constant 0 : index
    %c0_14 = arith.constant 0 : index
    %6 = vector.load %arg10[%c0_12, %c0_13, %c0_14] : memref<10x18x16xbf16, #tpu.memory_space<vmem>>, vector<8x16x16xbf16>
    %7 = vector.shape_cast %6 : vector<8x16x16xbf16> to vector<128x16xbf16>
    %c0_15 = arith.constant 0 : index
    %c0_16 = arith.constant 0 : index
    %8 = vector.load %arg11[%c0_15, %c0_16] : memref<128x144xbf16, #tpu.memory_space<vmem>>, vector<128x16xbf16>
    tpu.vector_store %arg11[%c0_15, %c0_16], %7 {strides = array<i32>} : memref<128x144xbf16, #tpu.memory_space<vmem>>, vector<128x16xbf16>,
    %c0_17 = arith.constant 0 : index
    %c1 = arith.constant 1 : index
    %c0_18 = arith.constant 0 : index
    %9 = vector.load %arg10[%c0_17, %c1, %c0_18] : memref<10x18x16xbf16, #tpu.memory_space<vmem>>, vector<8x16x16xbf16>
    %10 = vector.shape_cast %9 : vector<8x16x16xbf16> to vector<128x16xbf16>
    %c0_19 = arith.constant 0 : index
    %c16 = arith.constant 16 : index
    %11 = vector.load %arg11[%c0_19, %c16] : memref<128x144xbf16, #tpu.memory_space<vmem>>, vector<128x16xbf16>
    tpu.vector_store %arg11[%c0_19, %c16], %10 {strides = array<i32>} : memref<128x144xbf16, #tpu.memory_space<vmem>>, vector<128x16xbf16>,
    %c0_20 = arith.constant 0 : index
    %c2 = arith.constant 2 : index
    %c0_21 = arith.constant 0 : index
    %12 = vector.load %arg10[%c0_20, %c2, %c0_21] : memref<10x18x16xbf16, #tpu.memory_space<vmem>>, vector<8x16x16xbf16>
    %13 = vector.shape_cast %12 : vector<8x16x16xbf16> to vector<128x16xbf16>
    %c0_22 = arith.constant 0 : index
    %c32 = arith.constant 32 : index
    %14 = vector.load %arg11[%c0_22, %c32] : memref<128x144xbf16, #tpu.memory_space<vmem>>, vector<128x16xbf16>
    tpu.vector_store %arg11[%c0_22, %c32], %13 {strides = array<i32>} : memref<128x144xbf16, #tpu.memory_space<vmem>>, vector<128x16xbf16>,
    %c1_23 = arith.constant 1 : index
    %c0_24 = arith.constant 0 : index
    %c0_25 = arith.constant 0 : index
    %15 = vector.load %arg10[%c1_23, %c0_24, %c0_25] : memref<10x18x16xbf16, #tpu.memory_space<vmem>>, vector<8x16x16xbf16>
    %16 = vector.shape_cast %15 : vector<8x16x16xbf16> to vector<128x16xbf16>
    %c0_26 = arith.constant 0 : index
    %c48 = arith.constant 48 : index
    %17 = vector.load %arg11[%c0_26, %c48] : memref<128x144xbf16, #tpu.memory_space<vmem>>, vector<128x16xbf16>
    tpu.vector_store %arg11[%c0_26, %c48], %16 {strides = array<i32>} : memref<128x144xbf16, #tpu.memory_space<vmem>>, vector<128x16xbf16>,
    %c1_27 = arith.constant 1 : index
    %c1_28 = arith.constant 1 : index
    %c0_29 = arith.constant 0 : index
    %18 = vector.load %arg10[%c1_27, %c1_28, %c0_29] : memref<10x18x16xbf16, #tpu.memory_space<vmem>>, vector<8x16x16xbf16>
    %19 = vector.shape_cast %18 : vector<8x16x16xbf16> to vector<128x16xbf16>
    %c0_30 = arith.constant 0 : index
    %c64 = arith.constant 64 : index
    %20 = vector.load %arg11[%c0_30, %c64] : memref<128x144xbf16, #tpu.memory_space<vmem>>, vector<128x16xbf16>
    tpu.vector_store %arg11[%c0_30, %c64], %19 {strides = array<i32>} : memref<128x144xbf16, #tpu.memory_space<vmem>>, vector<128x16xbf16>,
    %c1_31 = arith.constant 1 : index
    %c2_32 = arith.constant 2 : index
    %c0_33 = arith.constant 0 : index
    %21 = vector.load %arg10[%c1_31, %c2_32, %c0_33] : memref<10x18x16xbf16, #tpu.memory_space<vmem>>, vector<8x16x16xbf16>
    %22 = vector.shape_cast %21 : vector<8x16x16xbf16> to vector<128x16xbf16>
    %c0_34 = arith.constant 0 : index
    %c80 = arith.constant 80 : index
    %23 = vector.load %arg11[%c0_34, %c80] : memref<128x144xbf16, #tpu.memory_space<vmem>>, vector<128x16xbf16>
    tpu.vector_store %arg11[%c0_34, %c80], %22 {strides = array<i32>} : memref<128x144xbf16, #tpu.memory_space<vmem>>, vector<128x16xbf16>,
    %c2_35 = arith.constant 2 : index
    %c0_36 = arith.constant 0 : index
    %c0_37 = arith.constant 0 : index
    %24 = vector.load %arg10[%c2_35, %c0_36, %c0_37] : memref<10x18x16xbf16, #tpu.memory_space<vmem>>, vector<8x16x16xbf16>
    %25 = vector.shape_cast %24 : vector<8x16x16xbf16> to vector<128x16xbf16>
    %c0_38 = arith.constant 0 : index
    %c96 = arith.constant 96 : index
    %26 = vector.load %arg11[%c0_38, %c96] : memref<128x144xbf16, #tpu.memory_space<vmem>>, vector<128x16xbf16>
    tpu.vector_store %arg11[%c0_38, %c96], %25 {strides = array<i32>} : memref<128x144xbf16, #tpu.memory_space<vmem>>, vector<128x16xbf16>,
    %c2_39 = arith.constant 2 : index
    %c1_40 = arith.constant 1 : index
    %c0_41 = arith.constant 0 : index
    %27 = vector.load %arg10[%c2_39, %c1_40, %c0_41] : memref<10x18x16xbf16, #tpu.memory_space<vmem>>, vector<8x16x16xbf16>
    %28 = vector.shape_cast %27 : vector<8x16x16xbf16> to vector<128x16xbf16>
    %c0_42 = arith.constant 0 : index
    %c112 = arith.constant 112 : index
    %29 = vector.load %arg11[%c0_42, %c112] : memref<128x144xbf16, #tpu.memory_space<vmem>>, vector<128x16xbf16>
    tpu.vector_store %arg11[%c0_42, %c112], %28 {strides = array<i32>} : memref<128x144xbf16, #tpu.memory_space<vmem>>, vector<128x16xbf16>,
    %c2_43 = arith.constant 2 : index
    %c2_44 = arith.constant 2 : index
    %c0_45 = arith.constant 0 : index
    %30 = vector.load %arg10[%c2_43, %c2_44, %c0_45] : memref<10x18x16xbf16, #tpu.memory_space<vmem>>, vector<8x16x16xbf16>
    %31 = vector.shape_cast %30 : vector<8x16x16xbf16> to vector<128x16xbf16>
    %c0_46 = arith.constant 0 : index
    %c128 = arith.constant 128 : index
    %32 = vector.load %arg11[%c0_46, %c128] : memref<128x144xbf16, #tpu.memory_space<vmem>>, vector<128x16xbf16>
    tpu.vector_store %arg11[%c0_46, %c128], %31 {strides = array<i32>} : memref<128x144xbf16, #tpu.memory_space<vmem>>, vector<128x16xbf16>,
    %c0_47 = arith.constant 0 : index
    %c0_48 = arith.constant 0 : index
    %33 = vector.load %arg11[%c0_47, %c0_48] : memref<128x144xbf16, #tpu.memory_space<vmem>>, vector<128x144xbf16>
    %c0_49 = arith.constant 0 : index
    %c0_50 = arith.constant 0 : index
    %34 = vector.load %arg4[%c0_49, %c0_50] : memref<144x16xbf16, #tpu.memory_space<vmem>>, vector<144x16xbf16>
    %cst = arith.constant dense<0.000000e+00> : vector<128x16xf32>
    %35 = tpu.matmul %33, %34, %cst {dimension_numbers = #tpu.dot_dimension_numbers<[1], [0], [0], [1], [0, 0, 1, 1], [], []>} : vector<128x144xbf16>, vector<144x16xbf16>, vector<128x16xf32> -> vector<128x16xf32>
    %c0_51 = arith.constant 0 : index
    %c0_52 = arith.constant 0 : index
    %36 = vector.load %arg5[%c0_51, %c0_52] : memref<1x16xf32, #tpu.memory_space<vmem>>, vector<1x16xf32>
    %37 = vector.broadcast %36 : vector<1x16xf32> to vector<128x16xf32>
    %38 = arith.addf %35, %37 : vector<128x16xf32>
    %cst_53 = arith.constant 0.000000e+00 : f32
    %39 = vector.broadcast %cst_53 : f32 to vector<128x16xf32>
    %40 = arith.maximumf %38, %39 : vector<128x16xf32>
    %41 = arith.truncf %40 : vector<128x16xf32> to vector<128x16xbf16>
    %c0_54 = arith.constant 0 : index
    %c0_55 = arith.constant 0 : index
    %42 = vector.load %arg6[%c0_54, %c0_55] : memref<16x128xbf16, #tpu.memory_space<vmem>>, vector<16x128xbf16>
    %cst_56 = arith.constant dense<0.000000e+00> : vector<128x128xf32>
    %43 = tpu.matmul %41, %42, %cst_56 {dimension_numbers = #tpu.dot_dimension_numbers<[1], [0], [0], [1], [0, 0, 1, 1], [], []>} : vector<128x16xbf16>, vector<16x128xbf16>, vector<128x128xf32> -> vector<128x128xf32>
    %c0_57 = arith.constant 0 : index
    %c0_58 = arith.constant 0 : index
    %44 = vector.load %arg7[%c0_57, %c0_58] : memref<1x128xf32, #tpu.memory_space<vmem>>, vector<1x128xf32>
    %45 = vector.broadcast %44 : vector<1x128xf32> to vector<128x128xf32>
    %46 = arith.addf %43, %45 : vector<128x128xf32>
    %47 = tpu.transpose %46, [1, 0] : vector<128x128xf32> -> vector<128x128xf32>
    %48 = vector.extract_strided_slice %47 {offsets = [0, 0], sizes = [3, 128], strides = [1, 1]} : vector<128x128xf32> to vector<3x128xf32>
    %49 = arith.truncf %48 : vector<3x128xf32> to vector<3x128xbf16>
    %c0_59 = arith.constant 0 : index
    %c0_60 = arith.constant 0 : index
    %c0_61 = arith.constant 0 : index
    %50 = vector.load %arg8[%c0_59, %c0_60, %c0_61] : memref<1x3x128xbf16, #tpu.memory_space<vmem>>, vector<1x3x128xbf16>
    %51 = vector.shape_cast %50 : vector<1x3x128xbf16> to vector<3x128xbf16>
    %52 = vector.shape_cast %49 : vector<3x128xbf16> to vector<1x3x128xbf16>
    tpu.vector_store %arg8[%c0_59, %c0_60, %c0_61], %52 {strides = array<i32>} : memref<1x3x128xbf16, #tpu.memory_space<vmem>>, vector<1x3x128xbf16>,
    %53 = vector.extract_strided_slice %47 {offsets = [8, 0], sizes = [3, 128], strides = [1, 1]} : vector<128x128xf32> to vector<3x128xf32>
    %54 = vector.extract_strided_slice %47 {offsets = [16, 0], sizes = [3, 128], strides = [1, 1]} : vector<128x128xf32> to vector<3x128xf32>
    %55 = vector.extract_strided_slice %47 {offsets = [24, 0], sizes = [3, 128], strides = [1, 1]} : vector<128x128xf32> to vector<3x128xf32>
    %cst_62 = arith.constant 4.13516665 : f32
    %56 = vector.broadcast %cst_62 : f32 to vector<3x128xf32>
    %57 = arith.minimumf %55, %56 : vector<3x128xf32>
    %58 = vector.extract_strided_slice %47 {offsets = [32, 0], sizes = [3, 128], strides = [1, 1]} : vector<128x128xf32> to vector<3x128xf32>
    %cst_63 = arith.constant 4.13516665 : f32
    %59 = vector.broadcast %cst_63 : f32 to vector<3x128xf32>
    %60 = arith.minimumf %58, %59 : vector<3x128xf32>
    %61 = tpu.iota {dimensions = array<i32: 1>} : vector<3x128xi32>
    %62 = arith.sitofp %61 : vector<3x128xi32> to vector<3x128xf32>
    %63 = tpu.iota {dimensions = array<i32: 0>} : vector<3x128xi32>
    %cst_64 = arith.constant 5.000000e-01 : f32
    %64 = vector.broadcast %cst_64 : f32 to vector<3x128xf32>
    %65 = arith.addf %62, %64 : vector<3x128xf32>
    %cst_65 = arith.constant 6.250000e-02 : f32
    %66 = vector.broadcast %cst_65 : f32 to vector<3x128xf32>
    %67 = arith.mulf %65, %66 : vector<3x128xf32>
    %68 = math.floor %67 : vector<3x128xf32>
    %cst_66 = arith.constant 1.600000e+01 : f32
    %69 = vector.broadcast %cst_66 : f32 to vector<3x128xf32>
    %70 = arith.mulf %68, %69 : vector<3x128xf32>
    %71 = arith.subf %62, %70 : vector<3x128xf32>
    %c8_i32 = arith.constant 8 : i32
    %72 = arith.muli %arg1, %c8_i32 : i32
    %73 = arith.sitofp %72 : i32 to f32
    %74 = vector.broadcast %73 : f32 to vector<3x128xf32>
    %75 = arith.addf %68, %74 : vector<3x128xf32>
    %cst_67 = arith.constant 1.600000e+01 : f32
    %76 = vector.broadcast %cst_67 : f32 to vector<3x128xf32>
    %77 = arith.mulf %71, %76 : vector<3x128xf32>
    %cst_68 = arith.constant 1.600000e+01 : f32
    %78 = vector.broadcast %cst_68 : f32 to vector<3x128xf32>
    %79 = arith.mulf %75, %78 : vector<3x128xf32>
    %cst_69 = arith.constant 22.6274166 : f32
    %80 = vector.broadcast %cst_69 : f32 to vector<3x128xf32>
    %cst_70 = arith.constant 45.2548332 : f32
    %81 = vector.broadcast %cst_70 : f32 to vector<3x128xf32>
    %c0_i32 = arith.constant 0 : i32
    %82 = vector.broadcast %c0_i32 : i32 to vector<3x128xi32>
    %83 = arith.cmpi eq, %63, %82 : vector<3x128xi32>
    %cst_71 = arith.constant 45.2548332 : f32
    %84 = vector.broadcast %cst_71 : f32 to vector<3x128xf32>
    %85 = arith.select %83, %84, %80 : vector<3x128xi1>, vector<3x128xf32>
    %c0_i32_72 = arith.constant 0 : i32
    %86 = vector.broadcast %c0_i32_72 : i32 to vector<3x128xi32>
    %87 = arith.cmpi eq, %63, %86 : vector<3x128xi32>
    %cst_73 = arith.constant 22.6274166 : f32
    %88 = vector.broadcast %cst_73 : f32 to vector<3x128xf32>
    %89 = arith.select %87, %88, %81 : vector<3x128xi1>, vector<3x128xf32>
    %c1_i32 = arith.constant 1 : i32
    %90 = vector.broadcast %c1_i32 : i32 to vector<3x128xi32>
    %91 = arith.cmpi eq, %63, %90 : vector<3x128xi32>
    %cst_74 = arith.constant 3.200000e+01 : f32
    %92 = vector.broadcast %cst_74 : f32 to vector<3x128xf32>
    %93 = arith.select %91, %92, %85 : vector<3x128xi1>, vector<3x128xf32>
    %c1_i32_75 = arith.constant 1 : i32
    %94 = vector.broadcast %c1_i32_75 : i32 to vector<3x128xi32>
    %95 = arith.cmpi eq, %63, %94 : vector<3x128xi32>
    %cst_76 = arith.constant 3.200000e+01 : f32
    %96 = vector.broadcast %cst_76 : f32 to vector<3x128xf32>
    %97 = arith.select %95, %96, %89 : vector<3x128xi1>, vector<3x128xf32>
    %98 = arith.mulf %53, %93 : vector<3x128xf32>
    %99 = arith.addf %98, %77 : vector<3x128xf32>
    %100 = arith.mulf %54, %97 : vector<3x128xf32>
    %101 = arith.addf %100, %79 : vector<3x128xf32>
    %102 = math.exp %57 : vector<3x128xf32>
    %103 = arith.mulf %102, %93 : vector<3x128xf32>
    %104 = math.exp %60 : vector<3x128xf32>
    %105 = arith.mulf %104, %97 : vector<3x128xf32>
    %cst_77 = arith.constant 5.000000e-01 : f32
    %106 = vector.broadcast %cst_77 : f32 to vector<3x128xf32>
    %107 = arith.mulf %106, %103 : vector<3x128xf32>
    %108 = arith.subf %99, %107 : vector<3x128xf32>
    %cst_78 = arith.constant 0.000000e+00 : f32
    %cst_79 = arith.constant 2.560000e+02 : f32
    %109 = vector.broadcast %cst_78 : f32 to vector<3x128xf32>
    %110 = arith.maximumf %109, %108 : vector<3x128xf32>
    %111 = vector.broadcast %cst_79 : f32 to vector<3x128xf32>
    %112 = arith.minimumf %111, %110 : vector<3x128xf32>
    %cst_80 = arith.constant 5.000000e-01 : f32
    %113 = vector.broadcast %cst_80 : f32 to vector<3x128xf32>
    %114 = arith.mulf %113, %105 : vector<3x128xf32>
    %115 = arith.subf %101, %114 : vector<3x128xf32>
    %cst_81 = arith.constant 0.000000e+00 : f32
    %cst_82 = arith.constant 2.560000e+02 : f32
    %116 = vector.broadcast %cst_81 : f32 to vector<3x128xf32>
    %117 = arith.maximumf %116, %115 : vector<3x128xf32>
    %118 = vector.broadcast %cst_82 : f32 to vector<3x128xf32>
    %119 = arith.minimumf %118, %117 : vector<3x128xf32>
    %cst_83 = arith.constant 5.000000e-01 : f32
    %120 = vector.broadcast %cst_83 : f32 to vector<3x128xf32>
    %121 = arith.mulf %120, %103 : vector<3x128xf32>
    %122 = arith.addf %99, %121 : vector<3x128xf32>
    %cst_84 = arith.constant 0.000000e+00 : f32
    %cst_85 = arith.constant 2.560000e+02 : f32
    %123 = vector.broadcast %cst_84 : f32 to vector<3x128xf32>
    %124 = arith.maximumf %123, %122 : vector<3x128xf32>
    %125 = vector.broadcast %cst_85 : f32 to vector<3x128xf32>
    %126 = arith.minimumf %125, %124 : vector<3x128xf32>
    %cst_86 = arith.constant 5.000000e-01 : f32
    %127 = vector.broadcast %cst_86 : f32 to vector<3x128xf32>
    %128 = arith.mulf %127, %105 : vector<3x128xf32>
    %129 = arith.addf %101, %128 : vector<3x128xf32>
    %cst_87 = arith.constant 0.000000e+00 : f32
    %cst_88 = arith.constant 2.560000e+02 : f32
    %130 = vector.broadcast %cst_87 : f32 to vector<3x128xf32>
    %131 = arith.maximumf %130, %129 : vector<3x128xf32>
    %132 = vector.broadcast %cst_88 : f32 to vector<3x128xf32>
    %133 = arith.minimumf %132, %131 : vector<3x128xf32>
    %134 = tpu.concatenate %112, %119, %126, %133 in 0 : vector<3x128xf32>, vector<3x128xf32>, vector<3x128xf32>, vector<3x128xf32> -> vector<12x128xf32>
    %c0_89 = arith.constant 0 : index
    %c0_90 = arith.constant 0 : index
    %c0_91 = arith.constant 0 : index
    %135 = vector.load %arg9[%c0_89, %c0_90, %c0_91] : memref<1x12x128xf32, #tpu.memory_space<vmem>>, vector<1x12x128xf32>
    %136 = vector.shape_cast %135 : vector<1x12x128xf32> to vector<12x128xf32>
    %137 = vector.shape_cast %134 : vector<12x128xf32> to vector<1x12x128xf32>
    tpu.vector_store %arg9[%c0_89, %c0_90, %c0_91], %137 {strides = array<i32>} : memref<1x12x128xf32, #tpu.memory_space<vmem>>, vector<1x12x128xf32>,
    return
  }
  func.func @transform_0(%arg0: i32, %arg1: i32) -> (i32, i32, i32, i32) {
    %c0_i32 = arith.constant 0 : i32
    %c0_i32_0 = arith.constant 0 : i32
    %c0_i32_1 = arith.constant 0 : i32
    return %arg0, %arg1, %c0_i32, %c0_i32_0 : i32, i32, i32, i32
  }
  func.func @transform_1(%arg0: i32, %arg1: i32) -> (i32, i32, i32, i32) {
    %c1_i32 = arith.constant 1 : i32
    %0 = arith.addi %arg1, %c1_i32 : i32
    %c4_i32 = arith.constant 4 : i32
    %1 = arith.muli %0, %c4_i32 : i32
    %c0_i32 = arith.constant 0 : i32
    %c0_i32_0 = arith.constant 0 : i32
    %c0_i32_1 = arith.constant 0 : i32
    return %arg0, %1, %c0_i32, %c0_i32_0 : i32, i32, i32, i32
  }
  func.func @transform_2(%arg0: i32, %arg1: i32) -> (i32, i32) {
    %c0_i32 = arith.constant 0 : i32
    %c0_i32_0 = arith.constant 0 : i32
    %c0_i32_1 = arith.constant 0 : i32
    return %c0_i32, %c0_i32_0 : i32, i32
  }
  func.func @transform_3(%arg0: i32, %arg1: i32) -> (i32, i32) {
    %c0_i32 = arith.constant 0 : i32
    %c0_i32_0 = arith.constant 0 : i32
    %c0_i32_1 = arith.constant 0 : i32
    return %c0_i32, %c0_i32_0 : i32, i32
  }
  func.func @transform_4(%arg0: i32, %arg1: i32) -> (i32, i32) {
    %c0_i32 = arith.constant 0 : i32
    %c0_i32_0 = arith.constant 0 : i32
    %c0_i32_1 = arith.constant 0 : i32
    return %c0_i32, %c0_i32_0 : i32, i32
  }
  func.func @transform_5(%arg0: i32, %arg1: i32) -> (i32, i32) {
    %c0_i32 = arith.constant 0 : i32
    %c0_i32_0 = arith.constant 0 : i32
    %c0_i32_1 = arith.constant 0 : i32
    return %c0_i32, %c0_i32_0 : i32, i32
  }
  func.func @transform_6(%arg0: i32, %arg1: i32) -> (i32, i32, i32) {
    %c0_i32 = arith.constant 0 : i32
    %c0_i32_0 = arith.constant 0 : i32
    return %arg0, %c0_i32, %arg1 : i32, i32, i32
  }
  func.func @transform_7(%arg0: i32, %arg1: i32) -> (i32, i32, i32) {
    %c0_i32 = arith.constant 0 : i32
    %c0_i32_0 = arith.constant 0 : i32
    return %arg0, %c0_i32, %arg1 : i32, i32, i32
  }
}

</mosaic_0001>

<llo_original>
// kernel: tpu_custom_call.1
$region0: #{tpu_custom_call.1}
  #allocation0 [shape = 'u32[]', space=smem, size = 0x4, offset = 0x4, fixed_abs, tag = 'smem constant byte address 0x4 - core index']
  #allocation1 [shape = 'u32[72,128]{1,0:T(1,128)}', space=vmem, size = 0x9000, scoped, tag = 'internal scratch']
  #allocation2 [shape = 'bf16[10,18,16]{2,1,0:T(8,128)(2,1)}', space=vmem, size = 0xf000, scoped, tag = 'scratch operand']
  #allocation3 [shape = 'bf16[128,144]{1,0:T(8,128)(2,1)}', space=vmem, size = 0x10000, scoped, tag = 'scratch operand']
  %s0 = inlined_call_operand.vmem [shape: bf16[2,18,18,16], index: 0, kind: input, shape index: {}]
  %s1 = inlined_call_operand.vmem [shape: bf16[2,18,18,16], index: 1, kind: input, shape index: {}]
  %s2 = inlined_call_operand.vmem [shape: bf16[144,16], index: 2, kind: input, shape index: {}]
  %s3 = inlined_call_operand.vmem [shape: f32[1,16], index: 3, kind: input, shape index: {}]
  %s4 = inlined_call_operand.vmem [shape: bf16[16,128], index: 4, kind: input, shape index: {}]
  %s5 = inlined_call_operand.vmem [shape: f32[1,128], index: 5, kind: input, shape index: {}]
  %s6 = inlined_call_operand.vmem [shape: bf16[2,3,256], index: 6, kind: output, shape index: {0}]
  %s7 = inlined_call_operand.vmem [shape: f32[2,12,256], index: 7, kind: output, shape index: {1}]
  %8 = xla_tuple %s6, %s7
  %s9 = sld [smem:[#allocation0]]
  $region99: #{tpu_custom_call.1} parent=0
    _
  %s11 = ssub.s32 1, %s9
  %s12 = scalar_select 0, %s11, %s9
  $region1: #{tpu_custom_call.1} parent=0
    #allocation4 [shape = 'u8[16384]{0}', space=vmem, size = 0x4000, scoped, tag = 'output window, operand 1']
    loop: start=0, step=1, limit=6
    $region2: #{tpu_custom_call.1} parent=1 // loop_pre_header
      _
    $region3: #{tpu_custom_call.1} parent=1 // loop_header
      %s14 = sphi 0, %s18
      %p15 = scmp.ge.s32.totalorder %s14, 6
      %s21 = sphi 0, %s33
      %s22 = sphi 0, %s29
      %s23 = sphi 0, %s21
      %s24 = sphi 0, %s22
      %s25 = sphi 0, %s23
      %s26 = sphi 0, %s24
      %s38 = sphi 0, %s40
      %s41 = sphi 0, %s38
      %s42 = sphi 0, %s41
      %s58 = sphi 0, %s42
      %s70 = sphi 0, %s72
      %s73 = sphi 0, %s70
      %s74 = sphi 0, %s73
      %s90 = sphi 0, %s74
      %s94 = sphi 0, %s94
      %s96 = sphi 0, %s94
      %s97 = sphi 0, %s96
      %s111 = sphi 0, %s97
      %s115 = sphi 0, %s115
      %s117 = sphi 0, %s115
      %s118 = sphi 0, %s117
      %s132 = sphi 0, %s118
      %s136 = sphi 0, %s136
      %s138 = sphi 0, %s136
      %s139 = sphi 0, %s138
      %s153 = sphi 0, %s139
      %s157 = sphi 0, %s157
      %s159 = sphi 0, %s157
      %s160 = sphi 0, %s159
      %s174 = sphi 0, %s160
      %s182 = sphi 0, %s184
      %s185 = sphi 0, %s182
      %s186 = sphi 0, %s185
      %s202 = sphi 0, %s186
      %s210 = sphi 0, %s212
      %s213 = sphi 0, %s210
      %s214 = sphi 0, %s213
      %s230 = sphi 0, %s214
    $region4: #{tpu_custom_call.1} parent=1 // loop_header_branch
      %17 = sbr.rel (%p15) target = $region8
    $region5: #{tpu_custom_call.1} parent=1 // loop_body
      %s19 = ssub.s32 %s14, 1
      %s20 = ssub.s32 %s14, 2
      %s27 = sadd.s32 1, %s22
      %p28 = scmp.ge.s32.totalorder %s27, 2
      %s29 = scalar_select %p28, 0, %s27
      %s30 = sadd.s32 1, %s21
      %s31 = scalar_select %p28, %s30, %s21
      %p32 = scmp.ge.s32.totalorder %s31, 2
      %s33 = scalar_select %p32, 0, %s31
      %s34 = ssub.s32 %s21, %s33
      %s35 = ssub.s32 %s22, %s29
      %s36 = sor.u32 %s34, %s35
      %p37 = scmp.eq.s32.totalorder %s36, 0
      %s39 = sadd.s32 %s38, 1
      %s40 = scalar_select %p37, %s38, %s39
      %p43 = pneg %p37
      %p44 = scmp.eq.s32.totalorder %s14, 3
      %p45 = por %p43, %p44
      %p46 = scmp.ne.s32.totalorder %s38, %s41
      %p47 = scmp.eq.s32.totalorder %s14, 0
      %p48 = por %p46, %p47
      %p49 = scmp.ne.s32.totalorder %s38, %s41
      %p50 = scmp.eq.s32.totalorder %s19, 3
      %p51 = por %p49, %p50
      %p52 = scmp.ne.s32.totalorder %s41, %s42
      %p53 = scmp.eq.s32.totalorder %s19, 0
      %p54 = por %p52, %p53
      %p55 = scmp.ne.s32.totalorder %s41, %s42
      %p56 = scmp.eq.s32.totalorder %s20, 3
      %p57 = por %p55, %p56
      %p59 = scmp.ne.s32.totalorder %s42, %s58
      %p60 = scmp.eq.s32.totalorder %s20, 0
      %p61 = por %p59, %p60
      %s62 = sadd.s32 %s22, 1
      %s63 = smul.u32 %s62, 4
      %s64 = sadd.s32 %s29, 1
      %s65 = smul.u32 %s64, 4
      %s66 = ssub.s32 %s21, %s33
      %s67 = ssub.s32 %s63, %s65
      %s68 = sor.u32 %s66, %s67
      %p69 = scmp.eq.s32.totalorder %s68, 0
      %s71 = sadd.s32 %s70, 1
      %s72 = scalar_select %p69, %s70, %s71
      %p75 = pneg %p69
      %p76 = scmp.eq.s32.totalorder %s14, 3
      %p77 = por %p75, %p76
      %p78 = scmp.ne.s32.totalorder %s70, %s73
      %p79 = scmp.eq.s32.totalorder %s14, 0
      %p80 = por %p78, %p79
      %p81 = scmp.ne.s32.totalorder %s70, %s73
      %p82 = scmp.eq.s32.totalorder %s19, 3
      %p83 = por %p81, %p82
      %p84 = scmp.ne.s32.totalorder %s73, %s74
      %p85 = scmp.eq.s32.totalorder %s19, 0
      %p86 = por %p84, %p85
      %p87 = scmp.ne.s32.totalorder %s73, %s74
      %p88 = scmp.eq.s32.totalorder %s20, 3
      %p89 = por %p87, %p88
      %p91 = scmp.ne.s32.totalorder %s74, %s90
      %p92 = scmp.eq.s32.totalorder %s20, 0
      %p93 = por %p91, %p92
      %s95 = sadd.s32 %s94, 1
      %p98 = scmp.eq.s32.totalorder %s14, 3
      %p99 = scmp.ne.s32.totalorder %s94, %s96
      %p100 = scmp.eq.s32.totalorder %s14, 0
      %p101 = por %p99, %p100
      %p102 = scmp.ne.s32.totalorder %s94, %s96
      %p103 = scmp.eq.s32.totalorder %s19, 3
      %p104 = por %p102, %p103
      %p105 = scmp.ne.s32.totalorder %s96, %s97
      %p106 = scmp.eq.s32.totalorder %s19, 0
      %p107 = por %p105, %p106
      %p108 = scmp.ne.s32.totalorder %s96, %s97
      %p109 = scmp.eq.s32.totalorder %s20, 3
      %p110 = por %p108, %p109
      %p112 = scmp.ne.s32.totalorder %s97, %s111
      %p113 = scmp.eq.s32.totalorder %s20, 0
      %p114 = por %p112, %p113
      %s116 = sadd.s32 %s115, 1
      %p119 = scmp.eq.s32.totalorder %s14, 3
      %p120 = scmp.ne.s32.totalorder %s115, %s117
      %p121 = scmp.eq.s32.totalorder %s14, 0
      %p122 = por %p120, %p121
      %p123 = scmp.ne.s32.totalorder %s115, %s117
      %p124 = scmp.eq.s32.totalorder %s19, 3
      %p125 = por %p123, %p124
      %p126 = scmp.ne.s32.totalorder %s117, %s118
      %p127 = scmp.eq.s32.totalorder %s19, 0
      %p128 = por %p126, %p127
      %p129 = scmp.ne.s32.totalorder %s117, %s118
      %p130 = scmp.eq.s32.totalorder %s20, 3
      %p131 = por %p129, %p130
      %p133 = scmp.ne.s32.totalorder %s118, %s132
      %p134 = scmp.eq.s32.totalorder %s20, 0
      %p135 = por %p133, %p134
      %s137 = sadd.s32 %s136, 1
      %p140 = scmp.eq.s32.totalorder %s14, 3
      %p141 = scmp.ne.s32.totalorder %s136, %s138
      %p142 = scmp.eq.s32.totalorder %s14, 0
      %p143 = por %p141, %p142
      %p144 = scmp.ne.s32.totalorder %s136, %s138
      %p145 = scmp.eq.s32.totalorder %s19, 3
      %p146 = por %p144, %p145
      %p147 = scmp.ne.s32.totalorder %s138, %s139
      %p148 = scmp.eq.s32.totalorder %s19, 0
      %p149 = por %p147, %p148
      %p150 = scmp.ne.s32.totalorder %s138, %s139
      %p151 = scmp.eq.s32.totalorder %s20, 3
      %p152 = por %p150, %p151
      %p154 = scmp.ne.s32.totalorder %s139, %s153
      %p155 = scmp.eq.s32.totalorder %s20, 0
      %p156 = por %p154, %p155
      %s158 = sadd.s32 %s157, 1
      %p161 = scmp.eq.s32.totalorder %s14, 3
      %p162 = scmp.ne.s32.totalorder %s157, %s159
      %p163 = scmp.eq.s32.totalorder %s14, 0
      %p164 = por %p162, %p163
      %p165 = scmp.ne.s32.totalorder %s157, %s159
      %p166 = scmp.eq.s32.totalorder %s19, 3
      %p167 = por %p165, %p166
      %p168 = scmp.ne.s32.totalorder %s159, %s160
      %p169 = scmp.eq.s32.totalorder %s19, 0
      %p170 = por %p168, %p169
      %p171 = scmp.ne.s32.totalorder %s159, %s160
      %p172 = scmp.eq.s32.totalorder %s20, 3
      %p173 = por %p171, %p172
      %p175 = scmp.ne.s32.totalorder %s160, %s174
      %p176 = scmp.eq.s32.totalorder %s20, 0
      %p177 = por %p175, %p176
      %s178 = ssub.s32 %s21, %s33
      %s179 = ssub.s32 %s22, %s29
      %s180 = sor.u32 %s178, %s179
      %p181 = scmp.eq.s32.totalorder %s180, 0
      %s183 = sadd.s32 %s182, 1
      %s184 = scalar_select %p181, %s182, %s183
      %p187 = pneg %p181
      %p188 = scmp.eq.s32.totalorder %s14, 3
      %p189 = por %p187, %p188
      %p190 = scmp.ne.s32.totalorder %s182, %s185
      %p191 = scmp.eq.s32.totalorder %s14, 0
      %p192 = por %p190, %p191
      %p193 = scmp.ne.s32.totalorder %s182, %s185
      %p194 = scmp.eq.s32.totalorder %s19, 3
      %p195 = por %p193, %p194
      %p196 = scmp.ne.s32.totalorder %s185, %s186
      %p197 = scmp.eq.s32.totalorder %s19, 0
      %p198 = por %p196, %p197
      %p199 = scmp.ne.s32.totalorder %s185, %s186
      %p200 = scmp.eq.s32.totalorder %s20, 3
      %p201 = por %p199, %p200
      %p203 = scmp.ne.s32.totalorder %s186, %s202
      %p204 = scmp.eq.s32.totalorder %s20, 0
      %p205 = por %p203, %p204
      %s206 = ssub.s32 %s21, %s33
      %s207 = ssub.s32 %s22, %s29
      %s208 = sor.u32 %s206, %s207
      %p209 = scmp.eq.s32.totalorder %s208, 0
      %s211 = sadd.s32 %s210, 1
      %s212 = scalar_select %p209, %s210, %s211
      %p215 = pneg %p209
      %p216 = scmp.eq.s32.totalorder %s14, 3
      %p217 = por %p215, %p216
      %p218 = scmp.ne.s32.totalorder %s210, %s213
      %p219 = scmp.eq.s32.totalorder %s14, 0
      %p220 = por %p218, %p219
      %p221 = scmp.ne.s32.totalorder %s210, %s213
      %p222 = scmp.eq.s32.totalorder %s19, 3
      %p223 = por %p221, %p222
      %p224 = scmp.ne.s32.totalorder %s213, %s214
      %p225 = scmp.eq.s32.totalorder %s19, 0
      %p226 = por %p224, %p225
      %p227 = scmp.ne.s32.totalorder %s213, %s214
      %p228 = scmp.eq.s32.totalorder %s20, 3
      %p229 = por %p227, %p228
      %p231 = scmp.ne.s32.totalorder %s214, %s230
      %p232 = scmp.eq.s32.totalorder %s20, 0
      %p233 = por %p231, %p232
      %p234 = scmp.le.s32.totalorder 1, %s14
      %p235 = scmp.lt.s32.totalorder %s14, 5
      %p236 = pnand %p234, %p235
      %p237 = pneg %p236
      // Predicated region
      $region9: #{tpu_custom_call.1} parent=5 // pred_check
        _
      $region10: #{tpu_custom_call.1} parent=5 // pred_check_branch
        %239 = sbr.rel (%p236) target = $region12
      $region11: #{tpu_custom_call.1} parent=5 // pred_region
        %s240 = ssub.s32 %s14, 1
        // Predicated region
        $region13: #{tpu_custom_call.1} parent=11 // pred_check
          %p241 = pneg %p107
        $region14: #{tpu_custom_call.1} parent=11 // pred_check_branch
          %243 = sbr.rel (%p241) target = $region16
        $region15: #{tpu_custom_call.1} parent=11 // pred_region
          _
        $region16: #{tpu_custom_call.1} parent=11 // pred_fallthru
          _
        // Predicated region
        $region17: #{tpu_custom_call.1} parent=11 // pred_check
          %p244 = pneg %p128
        $region18: #{tpu_custom_call.1} parent=11 // pred_check_branch
          %246 = sbr.rel (%p244) target = $region20
        $region19: #{tpu_custom_call.1} parent=11 // pred_region
          _
        $region20: #{tpu_custom_call.1} parent=11 // pred_fallthru
          _
        // Predicated region
        $region21: #{tpu_custom_call.1} parent=11 // pred_check
          %p247 = pneg %p149
        $region22: #{tpu_custom_call.1} parent=11 // pred_check_branch
          %249 = sbr.rel (%p247) target = $region24
        $region23: #{tpu_custom_call.1} parent=11 // pred_region
          _
        $region24: #{tpu_custom_call.1} parent=11 // pred_fallthru
          _
        // Predicated region
        $region25: #{tpu_custom_call.1} parent=11 // pred_check
          %p250 = pneg %p170
        $region26: #{tpu_custom_call.1} parent=11 // pred_check_branch
          %252 = sbr.rel (%p250) target = $region28
        $region27: #{tpu_custom_call.1} parent=11 // pred_region
          _
        $region28: #{tpu_custom_call.1} parent=11 // pred_fallthru
          _
      $region12: #{tpu_custom_call.1} parent=5 // pred_fallthru
        _
      %p253 = scmp.lt.s32.totalorder %s14, 4
      // Predicated region
      $region29: #{tpu_custom_call.1} parent=5 // pred_check
        %p254 = pneg %p253
      $region30: #{tpu_custom_call.1} parent=5 // pred_check_branch
        %256 = sbr.rel (%p254) target = $region32
      $region31: #{tpu_custom_call.1} parent=5 // pred_region
        // Predicated region
        $region33: #{tpu_custom_call.1} parent=31 // pred_check
          %p257 = pneg %p48
        $region34: #{tpu_custom_call.1} parent=31 // pred_check_branch
          %259 = sbr.rel (%p257) target = $region36
        $region35: #{tpu_custom_call.1} parent=31 // pred_region
          %s260 = smul.u32 8, %s22
          %s261 = ssub.s32 18, %s260
          %p262 = scmp.lt.s32.totalorder %s261, 8
          %s263 = scalar_select %p262, %s261, 8
          %s264 = smul.u32 4, %s263
          %s265 = smul.u32 %s264, 3
          %p266 = scmp.lt.s32.totalorder %s21, 1
          %s267 = scalar_select %p266, %s21, 1
          %p268 = scmp.lt.s32.totalorder %s260, 17
          %s269 = scalar_select %p268, %s260, 17
          %s270 = smul.addr %s269, 3
          %s271 = smul.addr %s267, 54
          %s272 = sadd.s32 %s270, %s271
          %s273 = smul.addr %s272, 4
          %s274 = scalar_lea.vmem %s0, %s273
          %s275 = smul.u32 8, %s22
          %s276 = ssub.s32 18, %s275
          %p277 = scmp.lt.s32.totalorder %s276, 8
          %s278 = scalar_select %p277, %s276, 8
          %s279 = smul.u32 4, %s278
          %s280 = smul.u32 %s279, 3
        $region36: #{tpu_custom_call.1} parent=31 // pred_fallthru
          _
        // Predicated region
        $region37: #{tpu_custom_call.1} parent=31 // pred_check
          %p281 = pneg %p80
        $region38: #{tpu_custom_call.1} parent=31 // pred_check_branch
          %283 = sbr.rel (%p281) target = $region40
        $region39: #{tpu_custom_call.1} parent=31 // pred_region
          %s284 = sadd.s32 %s22, 1
          %s285 = smul.u32 %s284, 4
          %s286 = smul.u32 2, %s285
          %p287 = scmp.lt.s32.totalorder %s21, 1
          %s288 = scalar_select %p287, %s21, 1
          %p289 = scmp.lt.s32.totalorder %s286, 17
          %s290 = scalar_select %p289, %s286, 17
          %s291 = smul.addr %s290, 3
          %s292 = smul.addr %s288, 54
          %s293 = sadd.s32 %s291, %s292
          %s294 = smul.addr %s293, 4
          %s295 = scalar_lea.vmem %s1, %s294
          %s296 = sadd.s32 %s22, 1
          %s297 = smul.u32 %s296, 4
          %s298 = smul.u32 2, %s297
        $region40: #{tpu_custom_call.1} parent=31 // pred_fallthru
          _
      $region32: #{tpu_custom_call.1} parent=5 // pred_fallthru
        _
      %p299 = scmp.le.s32.totalorder 1, %s14
      %p300 = scmp.lt.s32.totalorder %s14, 5
      %p301 = pnand %p299, %p300
      %p302 = pneg %p301
      // Predicated region
      $region41: #{tpu_custom_call.1} parent=5 // pred_check
        _
      $region42: #{tpu_custom_call.1} parent=5 // pred_check_branch
        %304 = sbr.rel (%p301) target = $region44
      $region43: #{tpu_custom_call.1} parent=5 // pred_region
        %s305 = ssub.s32 %s14, 1
        %s306 = smul.u32 8, %s24
        %s307 = ssub.s32 18, %s306
        %p308 = scmp.lt.s32.totalorder %s307, 8
        %s309 = scalar_select %p308, %s307, 8
        %s310 = smul.u32 4, %s309
        %s311 = smul.u32 %s310, 3
        %p312 = scmp.lt.s32.totalorder %s23, 1
        %s313 = scalar_select %p312, %s23, 1
        %p314 = scmp.lt.s32.totalorder %s306, 17
        %s315 = scalar_select %p314, %s306, 17
        %s316 = smul.addr %s315, 3
        %s317 = smul.addr %s313, 54
        %s318 = sadd.s32 %s316, %s317
        %s319 = smul.addr %s318, 4
        %s320 = scalar_lea.vmem %s0, %s319
        %p321 = pneg %p54
        %p322 = pneg %p51
        %s323 = sadd.s32 %s24, 1
        %s324 = smul.u32 %s323, 4
        %s325 = smul.u32 2, %s324
        %p326 = scmp.lt.s32.totalorder %s23, 1
        %s327 = scalar_select %p326, %s23, 1
        %p328 = scmp.lt.s32.totalorder %s325, 17
        %s329 = scalar_select %p328, %s325, 17
        %s330 = smul.addr %s329, 3
        %s331 = smul.addr %s327, 54
        %s332 = sadd.s32 %s330, %s331
        %s333 = smul.addr %s332, 4
        %s334 = scalar_lea.vmem %s1, %s333
        %p335 = pneg %p86
        %p336 = pneg %p83
        %p337 = pneg %p107
        %p338 = pneg %p104
        %p339 = pneg %p128
        %p340 = pneg %p125
        %p341 = pneg %p149
        %p342 = pneg %p146
        %p343 = pneg %p170
        %p344 = pneg %p167
        %p345 = pneg %p198
        %p346 = pneg %p195
        %p347 = scmp.lt.s32.totalorder %s23, 1
        %s348 = scalar_select %p347, %s23, 1
        %p349 = scmp.lt.s32.totalorder %s24, 1
        %s350 = scalar_select %p349, %s24, 1
        %s351 = smul.addr %s348, 2
        %s352 = sadd.s32 %s350, %s351
        %s353 = smul.addr %s352, 2
        %s354 = scalar_lea.vmem %s6, %s353
        %p355 = pneg %p226
        %p356 = pneg %p223
        %s357 = sand.u32 %s213, 1
        %s358 = sand.u32 %s213, 1
        %s359 = smul.addr %s358, 16
        %s360 = scalar_lea.vmem [#allocation4], %s359
        %s361 = smul.u32 8, %s24
        %s362 = ssub.s32 18, %s361
        %p363 = scmp.lt.s32.totalorder %s362, 8
        %s364 = scalar_select %p363, %s362, 8
        %s365 = smul.u32 4, %s364
        %s366 = smul.u32 %s365, 3
        %p367 = scmp.lt.s32.totalorder %s23, 1
        %s368 = scalar_select %p367, %s23, 1
        %p369 = scmp.lt.s32.totalorder %s361, 17
        %s370 = scalar_select %p369, %s361, 17
        %s371 = smul.addr %s370, 3
        %s372 = smul.addr %s368, 54
        %s373 = sadd.s32 %s371, %s372
        %s374 = smul.addr %s373, 4
        %s375 = scalar_lea.vmem %s0, %s374
        %s376 = smul.u32 8, %s24
        %s377 = ssub.s32 18, %s376
        %p378 = scmp.lt.s32.totalorder %s377, 8
        %s379 = scalar_select %p378, %s377, 8
        %s380 = smul.u32 4, %s379
        %s381 = smul.u32 %s380, 3
        %s382 = sadd.s32 %s24, 1
        %s383 = smul.u32 %s382, 4
        %s384 = smul.u32 2, %s383
        %p385 = scmp.lt.s32.totalorder %s23, 1
        %s386 = scalar_select %p385, %s23, 1
        %p387 = scmp.lt.s32.totalorder %s384, 17
        %s388 = scalar_select %p387, %s384, 17
        %s389 = smul.addr %s388, 3
        %s390 = smul.addr %s386, 54
        %s391 = sadd.s32 %s389, %s390
        %s392 = smul.addr %s391, 4
        %s393 = scalar_lea.vmem %s1, %s392
        %s394 = sadd.s32 %s24, 1
        %s395 = smul.u32 %s394, 4
        %s396 = smul.u32 2, %s395
        %p397 = scmp.lt.s32.totalorder %s23, 1
        %s398 = scalar_select %p397, %s23, 1
        %p399 = scmp.lt.s32.totalorder %s24, 1
        %s400 = scalar_select %p399, %s24, 1
        %s401 = smul.addr %s398, 2
        %s402 = sadd.s32 %s400, %s401
        %s403 = smul.addr %s402, 2
        %s404 = scalar_lea.vmem %s6, %s403
        %v406 = vld [vmem:[%s375] sm:$0xf]
        %v407 = vld [vmem:[%s375 + $0x4] sm:$0xf]
        %v408 = vld [vmem:[%s375 + $0x8] sm:$0x1]
        %v409 = vld [vmem:[%s375 + $0xc] sm:$0xf]
        %v410 = vld [vmem:[%s375 + $0x10] sm:$0xf]
        %v411 = vld [vmem:[%s375 + $0x14] sm:$0x1]
        %v412 = vld [vmem:[%s375 + $0x18] sm:$0xf]
        %v413 = vld [vmem:[%s375 + $0x1c] sm:$0xf]
        %v414 = vld [vmem:[%s375 + $0x20] sm:$0x1]
        %v415 = vld [vmem:[%s375 + $0x24] sm:$0xf]
        %v416 = vld [vmem:[%s375 + $0x28] sm:$0xf]
        %v417 = vld [vmem:[%s375 + $0x2c] sm:$0x1]
        %v418 = vld [vmem:[%s375 + $0x30] sm:$0xf]
        %v419 = vld [vmem:[%s375 + $0x34] sm:$0xf]
        %v420 = vld [vmem:[%s375 + $0x38] sm:$0x1]
        %v421 = vld [vmem:[%s375 + $0x3c] sm:$0xf]
        %v422 = vld [vmem:[%s375 + $0x40] sm:$0xf]
        %v423 = vld [vmem:[%s375 + $0x44] sm:$0x1]
        %v424 = vld [vmem:[%s375 + $0x48] sm:$0xf]
        %v425 = vld [vmem:[%s375 + $0x4c] sm:$0xf]
        %v426 = vld [vmem:[%s375 + $0x50] sm:$0x1]
        %v427 = vld [vmem:[%s375 + $0x54] sm:$0xf]
        %v428 = vld [vmem:[%s375 + $0x58] sm:$0xf]
        %v429 = vld [vmem:[%s375 + $0x5c] sm:$0x1]
        %vm430 = vcmask 125952
        %431 = vst.msk [vmem:[#allocation2] sm:$0xf] %vm430, %v406
        %432 = vst.msk [vmem:[#allocation2 + $0x4] sm:$0xf] %vm430, %v407
        %vm433 = vcmask 122880
        %434 = vst.msk [vmem:[#allocation2 + $0x8] sm:$0x1] %vm433, %v408
        %435 = vst.msk [vmem:[#allocation2 + $0xc] sm:$0xf] %vm430, %v409
        %436 = vst.msk [vmem:[#allocation2 + $0x10] sm:$0xf] %vm430, %v410
        %437 = vst.msk [vmem:[#allocation2 + $0x14] sm:$0x1] %vm433, %v411
        %438 = vst.msk [vmem:[#allocation2 + $0x18] sm:$0xf] %vm430, %v412
        %439 = vst.msk [vmem:[#allocation2 + $0x1c] sm:$0xf] %vm430, %v413
        %440 = vst.msk [vmem:[#allocation2 + $0x20] sm:$0x1] %vm433, %v414
        %441 = vst.msk [vmem:[#allocation2 + $0x24] sm:$0xf] %vm430, %v415
        %442 = vst.msk [vmem:[#allocation2 + $0x28] sm:$0xf] %vm430, %v416
        %443 = vst.msk [vmem:[#allocation2 + $0x2c] sm:$0x1] %vm433, %v417
        %444 = vst.msk [vmem:[#allocation2 + $0x30] sm:$0xf] %vm430, %v418
        %445 = vst.msk [vmem:[#allocation2 + $0x34] sm:$0xf] %vm430, %v419
        %446 = vst.msk [vmem:[#allocation2 + $0x38] sm:$0x1] %vm433, %v420
        %447 = vst.msk [vmem:[#allocation2 + $0x3c] sm:$0xf] %vm430, %v421
        %448 = vst.msk [vmem:[#allocation2 + $0x40] sm:$0xf] %vm430, %v422
        %449 = vst.msk [vmem:[#allocation2 + $0x44] sm:$0x1] %vm433, %v423
        %450 = vst.msk [vmem:[#allocation2 + $0x48] sm:$0xf] %vm430, %v424
        %451 = vst.msk [vmem:[#allocation2 + $0x4c] sm:$0xf] %vm430, %v425
        %452 = vst.msk [vmem:[#allocation2 + $0x50] sm:$0x1] %vm433, %v426
        %453 = vst.msk [vmem:[#allocation2 + $0x54] sm:$0xf] %vm430, %v427
        %454 = vst.msk [vmem:[#allocation2 + $0x58] sm:$0xf] %vm430, %v428
        %455 = vst.msk [vmem:[#allocation2 + $0x5c] sm:$0x1] %vm433, %v429
        %v456 = vld [vmem:[%s393] sm:$0xf]
        %v457 = vld [vmem:[%s393 + $0x4] sm:$0xf]
        %v458 = vld [vmem:[%s393 + $0x8] sm:$0x1]
        %v459 = vld [vmem:[%s393 + $0xc] sm:$0xf]
        %v460 = vld [vmem:[%s393 + $0x10] sm:$0xf]
        %v461 = vld [vmem:[%s393 + $0x14] sm:$0x1]
        %s462 = scalar_lea.vmem [#allocation2], 96
        %463 = vst.msk [vmem:[%s462] sm:$0xf] %vm430, %v456
        %464 = vst.msk [vmem:[%s462 + $0x4] sm:$0xf] %vm430, %v457
        %465 = vst.msk [vmem:[%s462 + $0x8] sm:$0x1] %vm433, %v458
        %466 = vst.msk [vmem:[%s462 + $0xc] sm:$0xf] %vm430, %v459
        %467 = vst.msk [vmem:[%s462 + $0x10] sm:$0xf] %vm430, %v460
        %468 = vst.msk [vmem:[%s462 + $0x14] sm:$0x1] %vm433, %v461
        %v469 = vld [vmem:[#allocation2] sm:$0xf]
        %v470 = vld [vmem:[#allocation2 + $0x4] sm:$0xf]
        %v471 = vld [vmem:[#allocation2 + $0xc] sm:$0xf]
        %v472 = vld [vmem:[#allocation2 + $0x10] sm:$0xf]
        %v473 = vld [vmem:[#allocation2 + $0x18] sm:$0xf]
        %v474 = vld [vmem:[#allocation2 + $0x1c] sm:$0xf]
        %v475 = vld [vmem:[#allocation2 + $0x24] sm:$0xf]
        %v476 = vld [vmem:[#allocation2 + $0x28] sm:$0xf]
        %v477 = vld [vmem:[#allocation2 + $0x30] sm:$0xf]
        %v478 = vld [vmem:[#allocation2 + $0x34] sm:$0xf]
        %v479 = vld [vmem:[#allocation2 + $0x3c] sm:$0xf]
        %v480 = vld [vmem:[#allocation2 + $0x40] sm:$0xf]
        %v481 = vld [vmem:[#allocation2 + $0x48] sm:$0xf]
        %v482 = vld [vmem:[#allocation2 + $0x4c] sm:$0xf]
        %v483 = vld [vmem:[#allocation2 + $0x54] sm:$0xf]
        %v484 = vld [vmem:[#allocation2 + $0x58] sm:$0xf]
        %485 = vst.msk [vmem:[#allocation3] sm:$0xf] %vm430, %v469
        %486 = vst.msk [vmem:[#allocation3 + $0x8] sm:$0xf] %vm430, %v470
        %487 = vst.msk [vmem:[#allocation3 + $0x10] sm:$0xf] %vm430, %v471
        %488 = vst.msk [vmem:[#allocation3 + $0x18] sm:$0xf] %vm430, %v472
        %489 = vst.msk [vmem:[#allocation3 + $0x20] sm:$0xf] %vm430, %v473
        %490 = vst.msk [vmem:[#allocation3 + $0x28] sm:$0xf] %vm430, %v474
        %491 = vst.msk [vmem:[#allocation3 + $0x30] sm:$0xf] %vm430, %v475
        %492 = vst.msk [vmem:[#allocation3 + $0x38] sm:$0xf] %vm430, %v476
        %493 = vst.msk [vmem:[#allocation3 + $0x40] sm:$0xf] %vm430, %v477
        %494 = vst.msk [vmem:[#allocation3 + $0x48] sm:$0xf] %vm430, %v478
        %495 = vst.msk [vmem:[#allocation3 + $0x50] sm:$0xf] %vm430, %v479
        %496 = vst.msk [vmem:[#allocation3 + $0x58] sm:$0xf] %vm430, %v480
        %497 = vst.msk [vmem:[#allocation3 + $0x60] sm:$0xf] %vm430, %v481
        %498 = vst.msk [vmem:[#allocation3 + $0x68] sm:$0xf] %vm430, %v482
        %499 = vst.msk [vmem:[#allocation3 + $0x70] sm:$0xf] %vm430, %v483
        %500 = vst.msk [vmem:[#allocation3 + $0x78] sm:$0xf] %vm430, %v484
        %v501 = vld [vmem:[#allocation2] sm:$0xf]
        %v502 = vld [vmem:[#allocation2 + $0x4] sm:$0xf]
        %v503 = vld [vmem:[#allocation2 + $0x8] sm:$0x1]
        %v504 = vld [vmem:[#allocation2 + $0xc] sm:$0xf]
        %v505 = vld [vmem:[#allocation2 + $0x10] sm:$0xf]
        %v506 = vld [vmem:[#allocation2 + $0x14] sm:$0x1]
        %v507 = vld [vmem:[#allocation2 + $0x18] sm:$0xf]
        %v508 = vld [vmem:[#allocation2 + $0x1c] sm:$0xf]
        %v509 = vld [vmem:[#allocation2 + $0x20] sm:$0x1]
        %v510 = vld [vmem:[#allocation2 + $0x24] sm:$0xf]
        %v511 = vld [vmem:[#allocation2 + $0x28] sm:$0xf]
        %v512 = vld [vmem:[#allocation2 + $0x2c] sm:$0x1]
        %v513 = vld [vmem:[#allocation2 + $0x30] sm:$0xf]
        %v514 = vld [vmem:[#allocation2 + $0x34] sm:$0xf]
        %v515 = vld [vmem:[#allocation2 + $0x38] sm:$0x1]
        %v516 = vld [vmem:[#allocation2 + $0x3c] sm:$0xf]
        %v517 = vld [vmem:[#allocation2 + $0x40] sm:$0xf]
        %v518 = vld [vmem:[#allocation2 + $0x44] sm:$0x1]
        %v519 = vld [vmem:[#allocation2 + $0x48] sm:$0xf]
        %v520 = vld [vmem:[#allocation2 + $0x4c] sm:$0xf]
        %v521 = vld [vmem:[#allocation2 + $0x50] sm:$0x1]
        %v522 = vld [vmem:[#allocation2 + $0x54] sm:$0xf]
        %v523 = vld [vmem:[#allocation2 + $0x58] sm:$0xf]
        %v524 = vld [vmem:[#allocation2 + $0x5c] sm:$0x1]
        %vm525 = vsmask.f32 3328
        %vm526 = vsmask.f32 7440
        %vm527 = vmor %vm525, %vm526
        %v529 = vshrl.u32 %v501, 16
        %v531 = vrot.slane %v529, 4
        %v532 = vshll.u32 %v501, 16
        %v534 = vrot.slane %v532, 5
        %v535 = vor.u32 %v531, %v534
        %v536 = vrot.slane %v535, 4
        %v538 = vshll.u32 %v502, 16
        %v540 = vrot.slane %v538, 5
        %v541 = vsel %vm527, %v536, %v540
        %v542 = vshrl.u32 %v502, 16
        %v544 = vrot.slane %v542, 4
        %v545 = vor.u32 %v544, %v540
        %v546 = vrot.slane %v545, 4
        %v548 = vshll.u32 %v503, 16
        %v550 = vrot.slane %v548, 5
        %v551 = vsel %vm527, %v546, %v550
        %v553 = vshrl.u32 %v504, 16
        %v555 = vrot.slane %v553, 4
        %v556 = vshll.u32 %v504, 16
        %v558 = vrot.slane %v556, 5
        %v559 = vor.u32 %v555, %v558
        %v560 = vrot.slane %v559, 4
        %v562 = vshll.u32 %v505, 16
        %v564 = vrot.slane %v562, 5
        %v565 = vsel %vm527, %v560, %v564
        %v566 = vshrl.u32 %v505, 16
        %v568 = vrot.slane %v566, 4
        %v569 = vor.u32 %v568, %v564
        %v570 = vrot.slane %v569, 4
        %v572 = vshll.u32 %v506, 16
        %v574 = vrot.slane %v572, 5
        %v575 = vsel %vm527, %v570, %v574
        %v577 = vshrl.u32 %v507, 16
        %v579 = vrot.slane %v577, 4
        %v580 = vshll.u32 %v507, 16
        %v582 = vrot.slane %v580, 5
        %v583 = vor.u32 %v579, %v582
        %v584 = vrot.slane %v583, 4
        %v586 = vshll.u32 %v508, 16
        %v588 = vrot.slane %v586, 5
        %v589 = vsel %vm527, %v584, %v588
        %v590 = vshrl.u32 %v508, 16
        %v592 = vrot.slane %v590, 4
        %v593 = vor.u32 %v592, %v588
        %v594 = vrot.slane %v593, 4
        %v596 = vshll.u32 %v509, 16
        %v598 = vrot.slane %v596, 5
        %v599 = vsel %vm527, %v594, %v598
        %v601 = vshrl.u32 %v510, 16
        %v603 = vrot.slane %v601, 4
        %v604 = vshll.u32 %v510, 16
        %v606 = vrot.slane %v604, 5
        %v607 = vor.u32 %v603, %v606
        %v608 = vrot.slane %v607, 4
        %v610 = vshll.u32 %v511, 16
        %v612 = vrot.slane %v610, 5
        %v613 = vsel %vm527, %v608, %v612
        %v614 = vshrl.u32 %v511, 16
        %v616 = vrot.slane %v614, 4
        %v617 = vor.u32 %v616, %v612
        %v618 = vrot.slane %v617, 4
        %v620 = vshll.u32 %v512, 16
        %v622 = vrot.slane %v620, 5
        %v623 = vsel %vm527, %v618, %v622
        %v625 = vshrl.u32 %v513, 16
        %v627 = vrot.slane %v625, 4
        %v628 = vshll.u32 %v513, 16
        %v630 = vrot.slane %v628, 5
        %v631 = vor.u32 %v627, %v630
        %v632 = vrot.slane %v631, 4
        %v634 = vshll.u32 %v514, 16
        %v636 = vrot.slane %v634, 5
        %v637 = vsel %vm527, %v632, %v636
        %v638 = vshrl.u32 %v514, 16
        %v640 = vrot.slane %v638, 4
        %v641 = vor.u32 %v640, %v636
        %v642 = vrot.slane %v641, 4
        %v644 = vshll.u32 %v515, 16
        %v646 = vrot.slane %v644, 5
        %v647 = vsel %vm527, %v642, %v646
        %v649 = vshrl.u32 %v516, 16
        %v651 = vrot.slane %v649, 4
        %v652 = vshll.u32 %v516, 16
        %v654 = vrot.slane %v652, 5
        %v655 = vor.u32 %v651, %v654
        %v656 = vrot.slane %v655, 4
        %v658 = vshll.u32 %v517, 16
        %v660 = vrot.slane %v658, 5
        %v661 = vsel %vm527, %v656, %v660
        %v662 = vshrl.u32 %v517, 16
        %v664 = vrot.slane %v662, 4
        %v665 = vor.u32 %v664, %v660
        %v666 = vrot.slane %v665, 4
        %v668 = vshll.u32 %v518, 16
        %v670 = vrot.slane %v668, 5
        %v671 = vsel %vm527, %v666, %v670
        %v673 = vshrl.u32 %v519, 16
        %v675 = vrot.slane %v673, 4
        %v676 = vshll.u32 %v519, 16
        %v678 = vrot.slane %v676, 5
        %v679 = vor.u32 %v675, %v678
        %v680 = vrot.slane %v679, 4
        %v682 = vshll.u32 %v520, 16
        %v684 = vrot.slane %v682, 5
        %v685 = vsel %vm527, %v680, %v684
        %v686 = vshrl.u32 %v520, 16
        %v688 = vrot.slane %v686, 4
        %v689 = vor.u32 %v688, %v684
        %v690 = vrot.slane %v689, 4
        %v692 = vshll.u32 %v521, 16
        %v694 = vrot.slane %v692, 5
        %v695 = vsel %vm527, %v690, %v694
        %v697 = vshrl.u32 %v522, 16
        %v699 = vrot.slane %v697, 4
        %v700 = vshll.u32 %v522, 16
        %v702 = vrot.slane %v700, 5
        %v703 = vor.u32 %v699, %v702
        %v704 = vrot.slane %v703, 4
        %v706 = vshll.u32 %v523, 16
        %v708 = vrot.slane %v706, 5
        %v709 = vsel %vm527, %v704, %v708
        %v710 = vshrl.u32 %v523, 16
        %v712 = vrot.slane %v710, 4
        %v713 = vor.u32 %v712, %v708
        %v714 = vrot.slane %v713, 4
        %v716 = vshll.u32 %v524, 16
        %v718 = vrot.slane %v716, 5
        %v719 = vsel %vm527, %v714, %v718
        %720 = vrot.lane.b32.xlu0 %v541, 16
        %v721 = vpop.permute.xlu0 %720
        %722 = vrot.lane.b32.xlu0 %v551, 16
        %v723 = vpop.permute.xlu0 %722
        %724 = vrot.lane.b32.xlu0 %v565, 16
        %v725 = vpop.permute.xlu0 %724
        %726 = vrot.lane.b32.xlu0 %v575, 16
        %v727 = vpop.permute.xlu0 %726
        %728 = vrot.lane.b32.xlu0 %v589, 16
        %v729 = vpop.permute.xlu0 %728
        %730 = vrot.lane.b32.xlu0 %v599, 16
        %v731 = vpop.permute.xlu0 %730
        %732 = vrot.lane.b32.xlu0 %v613, 16
        %v733 = vpop.permute.xlu0 %732
        %734 = vrot.lane.b32.xlu0 %v623, 16
        %v735 = vpop.permute.xlu0 %734
        %736 = vrot.lane.b32.xlu0 %v637, 16
        %v737 = vpop.permute.xlu0 %736
        %738 = vrot.lane.b32.xlu0 %v647, 16
        %v739 = vpop.permute.xlu0 %738
        %740 = vrot.lane.b32.xlu0 %v661, 16
        %v741 = vpop.permute.xlu0 %740
        %742 = vrot.lane.b32.xlu0 %v671, 16
        %v743 = vpop.permute.xlu0 %742
        %744 = vrot.lane.b32.xlu0 %v685, 16
        %v745 = vpop.permute.xlu0 %744
        %746 = vrot.lane.b32.xlu0 %v695, 16
        %v747 = vpop.permute.xlu0 %746
        %748 = vrot.lane.b32.xlu0 %v709, 16
        %v749 = vpop.permute.xlu0 %748
        %750 = vrot.lane.b32.xlu0 %v719, 16
        %v751 = vpop.permute.xlu0 %750
        %vm768 = vcmask 257152
        %769 = vst.msk [vmem:[#allocation3] sm:$0xf] %vm768, %v721
        %770 = vst.msk [vmem:[#allocation3 + $0x8] sm:$0xf] %vm768, %v723
        %771 = vst.msk [vmem:[#allocation3 + $0x10] sm:$0xf] %vm768, %v725
        %772 = vst.msk [vmem:[#allocation3 + $0x18] sm:$0xf] %vm768, %v727
        %773 = vst.msk [vmem:[#allocation3 + $0x20] sm:$0xf] %vm768, %v729
        %774 = vst.msk [vmem:[#allocation3 + $0x28] sm:$0xf] %vm768, %v731
        %775 = vst.msk [vmem:[#allocation3 + $0x30] sm:$0xf] %vm768, %v733
        %776 = vst.msk [vmem:[#allocation3 + $0x38] sm:$0xf] %vm768, %v735
        %777 = vst.msk [vmem:[#allocation3 + $0x40] sm:$0xf] %vm768, %v737
        %778 = vst.msk [vmem:[#allocation3 + $0x48] sm:$0xf] %vm768, %v739
        %779 = vst.msk [vmem:[#allocation3 + $0x50] sm:$0xf] %vm768, %v741
        %780 = vst.msk [vmem:[#allocation3 + $0x58] sm:$0xf] %vm768, %v743
        %781 = vst.msk [vmem:[#allocation3 + $0x60] sm:$0xf] %vm768, %v745
        %782 = vst.msk [vmem:[#allocation3 + $0x68] sm:$0xf] %vm768, %v747
        %783 = vst.msk [vmem:[#allocation3 + $0x70] sm:$0xf] %vm768, %v749
        %784 = vst.msk [vmem:[#allocation3 + $0x78] sm:$0xf] %vm768, %v751
        %v785 = vld [vmem:[#allocation2] sm:$0xe]
        %v786 = vld [vmem:[#allocation2 + $0x4] sm:$0xf]
        %v787 = vld [vmem:[#allocation2 + $0x8] sm:$0x1]
        %v788 = vld [vmem:[#allocation2 + $0xc] sm:$0xe]
        %v789 = vld [vmem:[#allocation2 + $0x10] sm:$0xf]
        %v790 = vld [vmem:[#allocation2 + $0x14] sm:$0x1]
        %v791 = vld [vmem:[#allocation2 + $0x18] sm:$0xe]
        %v792 = vld [vmem:[#allocation2 + $0x1c] sm:$0xf]
        %v793 = vld [vmem:[#allocation2 + $0x20] sm:$0x1]
        %v794 = vld [vmem:[#allocation2 + $0x24] sm:$0xe]
        %v795 = vld [vmem:[#allocation2 + $0x28] sm:$0xf]
        %v796 = vld [vmem:[#allocation2 + $0x2c] sm:$0x1]
        %v797 = vld [vmem:[#allocation2 + $0x30] sm:$0xe]
        %v798 = vld [vmem:[#allocation2 + $0x34] sm:$0xf]
        %v799 = vld [vmem:[#allocation2 + $0x38] sm:$0x1]
        %v800 = vld [vmem:[#allocation2 + $0x3c] sm:$0xe]
        %v801 = vld [vmem:[#allocation2 + $0x40] sm:$0xf]
        %v802 = vld [vmem:[#allocation2 + $0x44] sm:$0x1]
        %v803 = vld [vmem:[#allocation2 + $0x48] sm:$0xe]
        %v804 = vld [vmem:[#allocation2 + $0x4c] sm:$0xf]
        %v805 = vld [vmem:[#allocation2 + $0x50] sm:$0x1]
        %v806 = vld [vmem:[#allocation2 + $0x54] sm:$0xe]
        %v807 = vld [vmem:[#allocation2 + $0x58] sm:$0xf]
        %v808 = vld [vmem:[#allocation2 + $0x5c] sm:$0x1]
        %vm833 = vcmask 1042432
        %vm834 = vcmask 1046532
        %vm835 = vmor %vm833, %vm834
        %v836 = vrot.slane %v785, 5
        %v837 = vrot.slane %v836, 4
        %v838 = vrot.slane %v786, 5
        %v839 = vsel %vm835, %v837, %v838
        %v840 = vrot.slane %v838, 4
        %v841 = vrot.slane %v787, 5
        %v842 = vsel %vm835, %v840, %v841
        %v843 = vrot.slane %v788, 5
        %v844 = vrot.slane %v843, 4
        %v845 = vrot.slane %v789, 5
        %v846 = vsel %vm835, %v844, %v845
        %v847 = vrot.slane %v845, 4
        %v848 = vrot.slane %v790, 5
        %v849 = vsel %vm835, %v847, %v848
        %v850 = vrot.slane %v791, 5
        %v851 = vrot.slane %v850, 4
        %v852 = vrot.slane %v792, 5
        %v853 = vsel %vm835, %v851, %v852
        %v854 = vrot.slane %v852, 4
        %v855 = vrot.slane %v793, 5
        %v856 = vsel %vm835, %v854, %v855
        %v857 = vrot.slane %v794, 5
        %v858 = vrot.slane %v857, 4
        %v859 = vrot.slane %v795, 5
        %v860 = vsel %vm835, %v858, %v859
        %v861 = vrot.slane %v859, 4
        %v862 = vrot.slane %v796, 5
        %v863 = vsel %vm835, %v861, %v862
        %v864 = vrot.slane %v797, 5
        %v865 = vrot.slane %v864, 4
        %v866 = vrot.slane %v798, 5
        %v867 = vsel %vm835, %v865, %v866
        %v868 = vrot.slane %v866, 4
        %v869 = vrot.slane %v799, 5
        %v870 = vsel %vm835, %v868, %v869
        %v871 = vrot.slane %v800, 5
        %v872 = vrot.slane %v871, 4
        %v873 = vrot.slane %v801, 5
        %v874 = vsel %vm835, %v872, %v873
        %v875 = vrot.slane %v873, 4
        %v876 = vrot.slane %v802, 5
        %v877 = vsel %vm835, %v875, %v876
        %v878 = vrot.slane %v803, 5
        %v879 = vrot.slane %v878, 4
        %v880 = vrot.slane %v804, 5
        %v881 = vsel %vm835, %v879, %v880
        %v882 = vrot.slane %v880, 4
        %v883 = vrot.slane %v805, 5
        %v884 = vsel %vm835, %v882, %v883
        %v885 = vrot.slane %v806, 5
        %v886 = vrot.slane %v885, 4
        %v887 = vrot.slane %v807, 5
        %v888 = vsel %vm835, %v886, %v887
        %v889 = vrot.slane %v887, 4
        %v890 = vrot.slane %v808, 5
        %v891 = vsel %vm835, %v889, %v890
        %892 = vrot.lane.b32.xlu0 %v839, 32
        %v893 = vpop.permute.xlu0 %892
        %894 = vrot.lane.b32.xlu0 %v842, 32
        %v895 = vpop.permute.xlu0 %894
        %896 = vrot.lane.b32.xlu0 %v846, 32
        %v897 = vpop.permute.xlu0 %896
        %898 = vrot.lane.b32.xlu0 %v849, 32
        %v899 = vpop.permute.xlu0 %898
        %900 = vrot.lane.b32.xlu0 %v853, 32
        %v901 = vpop.permute.xlu0 %900
        %902 = vrot.lane.b32.xlu0 %v856, 32
        %v903 = vpop.permute.xlu0 %902
        %904 = vrot.lane.b32.xlu0 %v860, 32
        %v905 = vpop.permute.xlu0 %904
        %906 = vrot.lane.b32.xlu0 %v863, 32
        %v907 = vpop.permute.xlu0 %906
        %908 = vrot.lane.b32.xlu0 %v867, 32
        %v909 = vpop.permute.xlu0 %908
        %910 = vrot.lane.b32.xlu0 %v870, 32
        %v911 = vpop.permute.xlu0 %910
        %912 = vrot.lane.b32.xlu0 %v874, 32
        %v913 = vpop.permute.xlu0 %912
        %914 = vrot.lane.b32.xlu0 %v877, 32
        %v915 = vpop.permute.xlu0 %914
        %916 = vrot.lane.b32.xlu0 %v881, 32
        %v917 = vpop.permute.xlu0 %916
        %918 = vrot.lane.b32.xlu0 %v884, 32
        %v919 = vpop.permute.xlu0 %918
        %920 = vrot.lane.b32.xlu0 %v888, 32
        %v921 = vpop.permute.xlu0 %920
        %922 = vrot.lane.b32.xlu0 %v891, 32
        %v923 = vpop.permute.xlu0 %922
        %vm940 = vcmask 388352
        %941 = vst.msk [vmem:[#allocation3] sm:$0xf] %vm940, %v893
        %942 = vst.msk [vmem:[#allocation3 + $0x8] sm:$0xf] %vm940, %v895
        %943 = vst.msk [vmem:[#allocation3 + $0x10] sm:$0xf] %vm940, %v897
        %944 = vst.msk [vmem:[#allocation3 + $0x18] sm:$0xf] %vm940, %v899
        %945 = vst.msk [vmem:[#allocation3 + $0x20] sm:$0xf] %vm940, %v901
        %946 = vst.msk [vmem:[#allocation3 + $0x28] sm:$0xf] %vm940, %v903
        %947 = vst.msk [vmem:[#allocation3 + $0x30] sm:$0xf] %vm940, %v905
        %948 = vst.msk [vmem:[#allocation3 + $0x38] sm:$0xf] %vm940, %v907
        %949 = vst.msk [vmem:[#allocation3 + $0x40] sm:$0xf] %vm940, %v909
        %950 = vst.msk [vmem:[#allocation3 + $0x48] sm:$0xf] %vm940, %v911
        %951 = vst.msk [vmem:[#allocation3 + $0x50] sm:$0xf] %vm940, %v913
        %952 = vst.msk [vmem:[#allocation3 + $0x58] sm:$0xf] %vm940, %v915
        %953 = vst.msk [vmem:[#allocation3 + $0x60] sm:$0xf] %vm940, %v917
        %954 = vst.msk [vmem:[#allocation3 + $0x68] sm:$0xf] %vm940, %v919
        %955 = vst.msk [vmem:[#allocation3 + $0x70] sm:$0xf] %vm940, %v921
        %956 = vst.msk [vmem:[#allocation3 + $0x78] sm:$0xf] %vm940, %v923
        %s957 = scalar_lea.vmem [#allocation2], 12
        %v958 = vld [vmem:[%s957] sm:$0xf]
        %v959 = vld [vmem:[%s957 + $0x4] sm:$0xf]
        %v960 = vld [vmem:[%s957 + $0xc] sm:$0xf]
        %v961 = vld [vmem:[%s957 + $0x10] sm:$0xf]
        %v962 = vld [vmem:[%s957 + $0x18] sm:$0xf]
        %v963 = vld [vmem:[%s957 + $0x1c] sm:$0xf]
        %v964 = vld [vmem:[%s957 + $0x24] sm:$0xf]
        %v965 = vld [vmem:[%s957 + $0x28] sm:$0xf]
        %v966 = vld [vmem:[%s957 + $0x30] sm:$0xf]
        %v967 = vld [vmem:[%s957 + $0x34] sm:$0xf]
        %v968 = vld [vmem:[%s957 + $0x3c] sm:$0xf]
        %v969 = vld [vmem:[%s957 + $0x40] sm:$0xf]
        %v970 = vld [vmem:[%s957 + $0x48] sm:$0xf]
        %v971 = vld [vmem:[%s957 + $0x4c] sm:$0xf]
        %v972 = vld [vmem:[%s957 + $0x54] sm:$0xf]
        %v973 = vld [vmem:[%s957 + $0x58] sm:$0xf]
        %990 = vrot.lane.b32.xlu0 %v958, 48
        %v991 = vpop.permute.xlu0 %990
        %992 = vrot.lane.b32.xlu0 %v959, 48
        %v993 = vpop.permute.xlu0 %992
        %994 = vrot.lane.b32.xlu0 %v960, 48
        %v995 = vpop.permute.xlu0 %994
        %996 = vrot.lane.b32.xlu0 %v961, 48
        %v997 = vpop.permute.xlu0 %996
        %998 = vrot.lane.b32.xlu0 %v962, 48
        %v999 = vpop.permute.xlu0 %998
        %1000 = vrot.lane.b32.xlu0 %v963, 48
        %v1001 = vpop.permute.xlu0 %1000
        %1002 = vrot.lane.b32.xlu0 %v964, 48
        %v1003 = vpop.permute.xlu0 %1002
        %1004 = vrot.lane.b32.xlu0 %v965, 48
        %v1005 = vpop.permute.xlu0 %1004
        %1006 = vrot.lane.b32.xlu0 %v966, 48
        %v1007 = vpop.permute.xlu0 %1006
        %1008 = vrot.lane.b32.xlu0 %v967, 48
        %v1009 = vpop.permute.xlu0 %1008
        %1010 = vrot.lane.b32.xlu0 %v968, 48
        %v1011 = vpop.permute.xlu0 %1010
        %1012 = vrot.lane.b32.xlu0 %v969, 48
        %v1013 = vpop.permute.xlu0 %1012
        %1014 = vrot.lane.b32.xlu0 %v970, 48
        %v1015 = vpop.permute.xlu0 %1014
        %1016 = vrot.lane.b32.xlu0 %v971, 48
        %v1017 = vpop.permute.xlu0 %1016
        %1018 = vrot.lane.b32.xlu0 %v972, 48
        %v1019 = vpop.permute.xlu0 %1018
        %1020 = vrot.lane.b32.xlu0 %v973, 48
        %v1021 = vpop.permute.xlu0 %1020
        %vm1038 = vcmask 519552
        %1039 = vst.msk [vmem:[#allocation3] sm:$0xf] %vm1038, %v991
        %1040 = vst.msk [vmem:[#allocation3 + $0x8] sm:$0xf] %vm1038, %v993
        %1041 = vst.msk [vmem:[#allocation3 + $0x10] sm:$0xf] %vm1038, %v995
        %1042 = vst.msk [vmem:[#allocation3 + $0x18] sm:$0xf] %vm1038, %v997
        %1043 = vst.msk [vmem:[#allocation3 + $0x20] sm:$0xf] %vm1038, %v999
        %1044 = vst.msk [vmem:[#allocation3 + $0x28] sm:$0xf] %vm1038, %v1001
        %1045 = vst.msk [vmem:[#allocation3 + $0x30] sm:$0xf] %vm1038, %v1003
        %1046 = vst.msk [vmem:[#allocation3 + $0x38] sm:$0xf] %vm1038, %v1005
        %1047 = vst.msk [vmem:[#allocation3 + $0x40] sm:$0xf] %vm1038, %v1007
        %1048 = vst.msk [vmem:[#allocation3 + $0x48] sm:$0xf] %vm1038, %v1009
        %1049 = vst.msk [vmem:[#allocation3 + $0x50] sm:$0xf] %vm1038, %v1011
        %1050 = vst.msk [vmem:[#allocation3 + $0x58] sm:$0xf] %vm1038, %v1013
        %1051 = vst.msk [vmem:[#allocation3 + $0x60] sm:$0xf] %vm1038, %v1015
        %1052 = vst.msk [vmem:[#allocation3 + $0x68] sm:$0xf] %vm1038, %v1017
        %1053 = vst.msk [vmem:[#allocation3 + $0x70] sm:$0xf] %vm1038, %v1019
        %1054 = vst.msk [vmem:[#allocation3 + $0x78] sm:$0xf] %vm1038, %v1021
        %v1055 = vld [vmem:[%s957] sm:$0xf]
        %v1056 = vld [vmem:[%s957 + $0x4] sm:$0xf]
        %v1057 = vld [vmem:[%s957 + $0x8] sm:$0x1]
        %v1058 = vld [vmem:[%s957 + $0xc] sm:$0xf]
        %v1059 = vld [vmem:[%s957 + $0x10] sm:$0xf]
        %v1060 = vld [vmem:[%s957 + $0x14] sm:$0x1]
        %v1061 = vld [vmem:[%s957 + $0x18] sm:$0xf]
        %v1062 = vld [vmem:[%s957 + $0x1c] sm:$0xf]
        %v1063 = vld [vmem:[%s957 + $0x20] sm:$0x1]
        %v1064 = vld [vmem:[%s957 + $0x24] sm:$0xf]
        %v1065 = vld [vmem:[%s957 + $0x28] sm:$0xf]
        %v1066 = vld [vmem:[%s957 + $0x2c] sm:$0x1]
        %v1067 = vld [vmem:[%s957 + $0x30] sm:$0xf]
        %v1068 = vld [vmem:[%s957 + $0x34] sm:$0xf]
        %v1069 = vld [vmem:[%s957 + $0x38] sm:$0x1]
        %v1070 = vld [vmem:[%s957 + $0x3c] sm:$0xf]
        %v1071 = vld [vmem:[%s957 + $0x40] sm:$0xf]
        %v1072 = vld [vmem:[%s957 + $0x44] sm:$0x1]
        %v1073 = vld [vmem:[%s957 + $0x48] sm:$0xf]
        %v1074 = vld [vmem:[%s957 + $0x4c] sm:$0xf]
        %v1075 = vld [vmem:[%s957 + $0x50] sm:$0x1]
        %v1076 = vld [vmem:[%s957 + $0x54] sm:$0xf]
        %v1077 = vld [vmem:[%s957 + $0x58] sm:$0xf]
        %v1078 = vld [vmem:[%s957 + $0x5c] sm:$0x1]
        %v1080 = vshrl.u32 %v1055, 16
        %v1082 = vrot.slane %v1080, 4
        %v1083 = vshll.u32 %v1055, 16
        %v1085 = vrot.slane %v1083, 5
        %v1086 = vor.u32 %v1082, %v1085
        %v1087 = vrot.slane %v1086, 4
        %v1089 = vshll.u32 %v1056, 16
        %v1091 = vrot.slane %v1089, 5
        %v1092 = vsel %vm527, %v1087, %v1091
        %v1093 = vshrl.u32 %v1056, 16
        %v1095 = vrot.slane %v1093, 4
        %v1096 = vor.u32 %v1095, %v1091
        %v1097 = vrot.slane %v1096, 4
        %v1099 = vshll.u32 %v1057, 16
        %v1101 = vrot.slane %v1099, 5
        %v1102 = vsel %vm527, %v1097, %v1101
        %v1104 = vshrl.u32 %v1058, 16
        %v1106 = vrot.slane %v1104, 4
        %v1107 = vshll.u32 %v1058, 16
        %v1109 = vrot.slane %v1107, 5
        %v1110 = vor.u32 %v1106, %v1109
        %v1111 = vrot.slane %v1110, 4
        %v1113 = vshll.u32 %v1059, 16
        %v1115 = vrot.slane %v1113, 5
        %v1116 = vsel %vm527, %v1111, %v1115
        %v1117 = vshrl.u32 %v1059, 16
        %v1119 = vrot.slane %v1117, 4
        %v1120 = vor.u32 %v1119, %v1115
        %v1121 = vrot.slane %v1120, 4
        %v1123 = vshll.u32 %v1060, 16
        %v1125 = vrot.slane %v1123, 5
        %v1126 = vsel %vm527, %v1121, %v1125
        %v1128 = vshrl.u32 %v1061, 16
        %v1130 = vrot.slane %v1128, 4
        %v1131 = vshll.u32 %v1061, 16
        %v1133 = vrot.slane %v1131, 5
        %v1134 = vor.u32 %v1130, %v1133
        %v1135 = vrot.slane %v1134, 4
        %v1137 = vshll.u32 %v1062, 16
        %v1139 = vrot.slane %v1137, 5
        %v1140 = vsel %vm527, %v1135, %v1139
        %v1141 = vshrl.u32 %v1062, 16
        %v1143 = vrot.slane %v1141, 4
        %v1144 = vor.u32 %v1143, %v1139
        %v1145 = vrot.slane %v1144, 4
        %v1147 = vshll.u32 %v1063, 16
        %v1149 = vrot.slane %v1147, 5
        %v1150 = vsel %vm527, %v1145, %v1149
        %v1152 = vshrl.u32 %v1064, 16
        %v1154 = vrot.slane %v1152, 4
        %v1155 = vshll.u32 %v1064, 16
        %v1157 = vrot.slane %v1155, 5
        %v1158 = vor.u32 %v1154, %v1157
        %v1159 = vrot.slane %v1158, 4
        %v1161 = vshll.u32 %v1065, 16
        %v1163 = vrot.slane %v1161, 5
        %v1164 = vsel %vm527, %v1159, %v1163
        %v1165 = vshrl.u32 %v1065, 16
        %v1167 = vrot.slane %v1165, 4
        %v1168 = vor.u32 %v1167, %v1163
        %v1169 = vrot.slane %v1168, 4
        %v1171 = vshll.u32 %v1066, 16
        %v1173 = vrot.slane %v1171, 5
        %v1174 = vsel %vm527, %v1169, %v1173
        %v1176 = vshrl.u32 %v1067, 16
        %v1178 = vrot.slane %v1176, 4
        %v1179 = vshll.u32 %v1067, 16
        %v1181 = vrot.slane %v1179, 5
        %v1182 = vor.u32 %v1178, %v1181
        %v1183 = vrot.slane %v1182, 4
        %v1185 = vshll.u32 %v1068, 16
        %v1187 = vrot.slane %v1185, 5
        %v1188 = vsel %vm527, %v1183, %v1187
        %v1189 = vshrl.u32 %v1068, 16
        %v1191 = vrot.slane %v1189, 4
        %v1192 = vor.u32 %v1191, %v1187
        %v1193 = vrot.slane %v1192, 4
        %v1195 = vshll.u32 %v1069, 16
        %v1197 = vrot.slane %v1195, 5
        %v1198 = vsel %vm527, %v1193, %v1197
        %v1200 = vshrl.u32 %v1070, 16
        %v1202 = vrot.slane %v1200, 4
        %v1203 = vshll.u32 %v1070, 16
        %v1205 = vrot.slane %v1203, 5
        %v1206 = vor.u32 %v1202, %v1205
        %v1207 = vrot.slane %v1206, 4
        %v1209 = vshll.u32 %v1071, 16
        %v1211 = vrot.slane %v1209, 5
        %v1212 = vsel %vm527, %v1207, %v1211
        %v1213 = vshrl.u32 %v1071, 16
        %v1215 = vrot.slane %v1213, 4
        %v1216 = vor.u32 %v1215, %v1211
        %v1217 = vrot.slane %v1216, 4
        %v1219 = vshll.u32 %v1072, 16
        %v1221 = vrot.slane %v1219, 5
        %v1222 = vsel %vm527, %v1217, %v1221
        %v1224 = vshrl.u32 %v1073, 16
        %v1226 = vrot.slane %v1224, 4
        %v1227 = vshll.u32 %v1073, 16
        %v1229 = vrot.slane %v1227, 5
        %v1230 = vor.u32 %v1226, %v1229
        %v1231 = vrot.slane %v1230, 4
        %v1233 = vshll.u32 %v1074, 16
        %v1235 = vrot.slane %v1233, 5
        %v1236 = vsel %vm527, %v1231, %v1235
        %v1237 = vshrl.u32 %v1074, 16
        %v1239 = vrot.slane %v1237, 4
        %v1240 = vor.u32 %v1239, %v1235
        %v1241 = vrot.slane %v1240, 4
        %v1243 = vshll.u32 %v1075, 16
        %v1245 = vrot.slane %v1243, 5
        %v1246 = vsel %vm527, %v1241, %v1245
        %v1248 = vshrl.u32 %v1076, 16
        %v1250 = vrot.slane %v1248, 4
        %v1251 = vshll.u32 %v1076, 16
        %v1253 = vrot.slane %v1251, 5
        %v1254 = vor.u32 %v1250, %v1253
        %v1255 = vrot.slane %v1254, 4
        %v1257 = vshll.u32 %v1077, 16
        %v1259 = vrot.slane %v1257, 5
        %v1260 = vsel %vm527, %v1255, %v1259
        %v1261 = vshrl.u32 %v1077, 16
        %v1263 = vrot.slane %v1261, 4
        %v1264 = vor.u32 %v1263, %v1259
        %v1265 = vrot.slane %v1264, 4
        %v1267 = vshll.u32 %v1078, 16
        %v1269 = vrot.slane %v1267, 5
        %v1270 = vsel %vm527, %v1265, %v1269
        %1271 = vrot.lane.b32.xlu0 %v1092, 64
        %v1272 = vpop.permute.xlu0 %1271
        %1273 = vrot.lane.b32.xlu0 %v1102, 64
        %v1274 = vpop.permute.xlu0 %1273
        %1275 = vrot.lane.b32.xlu0 %v1116, 64
        %v1276 = vpop.permute.xlu0 %1275
        %1277 = vrot.lane.b32.xlu0 %v1126, 64
        %v1278 = vpop.permute.xlu0 %1277
        %1279 = vrot.lane.b32.xlu0 %v1140, 64
        %v1280 = vpop.permute.xlu0 %1279
        %1281 = vrot.lane.b32.xlu0 %v1150, 64
        %v1282 = vpop.permute.xlu0 %1281
        %1283 = vrot.lane.b32.xlu0 %v1164, 64
        %v1284 = vpop.permute.xlu0 %1283
        %1285 = vrot.lane.b32.xlu0 %v1174, 64
        %v1286 = vpop.permute.xlu0 %1285
        %1287 = vrot.lane.b32.xlu0 %v1188, 64
        %v1288 = vpop.permute.xlu0 %1287
        %1289 = vrot.lane.b32.xlu0 %v1198, 64
        %v1290 = vpop.permute.xlu0 %1289
        %1291 = vrot.lane.b32.xlu0 %v1212, 64
        %v1292 = vpop.permute.xlu0 %1291
        %1293 = vrot.lane.b32.xlu0 %v1222, 64
        %v1294 = vpop.permute.xlu0 %1293
        %1295 = vrot.lane.b32.xlu0 %v1236, 64
        %v1296 = vpop.permute.xlu0 %1295
        %1297 = vrot.lane.b32.xlu0 %v1246, 64
        %v1298 = vpop.permute.xlu0 %1297
        %1299 = vrot.lane.b32.xlu0 %v1260, 64
        %v1300 = vpop.permute.xlu0 %1299
        %1301 = vrot.lane.b32.xlu0 %v1270, 64
        %v1302 = vpop.permute.xlu0 %1301
        %vm1319 = vcmask 650752
        %1320 = vst.msk [vmem:[#allocation3] sm:$0xf] %vm1319, %v1272
        %1321 = vst.msk [vmem:[#allocation3 + $0x8] sm:$0xf] %vm1319, %v1274
        %1322 = vst.msk [vmem:[#allocation3 + $0x10] sm:$0xf] %vm1319, %v1276
        %1323 = vst.msk [vmem:[#allocation3 + $0x18] sm:$0xf] %vm1319, %v1278
        %1324 = vst.msk [vmem:[#allocation3 + $0x20] sm:$0xf] %vm1319, %v1280
        %1325 = vst.msk [vmem:[#allocation3 + $0x28] sm:$0xf] %vm1319, %v1282
        %1326 = vst.msk [vmem:[#allocation3 + $0x30] sm:$0xf] %vm1319, %v1284
        %1327 = vst.msk [vmem:[#allocation3 + $0x38] sm:$0xf] %vm1319, %v1286
        %1328 = vst.msk [vmem:[#allocation3 + $0x40] sm:$0xf] %vm1319, %v1288
        %1329 = vst.msk [vmem:[#allocation3 + $0x48] sm:$0xf] %vm1319, %v1290
        %1330 = vst.msk [vmem:[#allocation3 + $0x50] sm:$0xf] %vm1319, %v1292
        %1331 = vst.msk [vmem:[#allocation3 + $0x58] sm:$0xf] %vm1319, %v1294
        %1332 = vst.msk [vmem:[#allocation3 + $0x60] sm:$0xf] %vm1319, %v1296
        %1333 = vst.msk [vmem:[#allocation3 + $0x68] sm:$0xf] %vm1319, %v1298
        %1334 = vst.msk [vmem:[#allocation3 + $0x70] sm:$0xf] %vm1319, %v1300
        %1335 = vst.msk [vmem:[#allocation3 + $0x78] sm:$0xf] %vm1319, %v1302
        %v1336 = vld [vmem:[%s957] sm:$0xe]
        %v1337 = vld [vmem:[%s957 + $0x4] sm:$0xf]
        %v1338 = vld [vmem:[%s957 + $0x8] sm:$0x1]
        %v1339 = vld [vmem:[%s957 + $0xc] sm:$0xe]
        %v1340 = vld [vmem:[%s957 + $0x10] sm:$0xf]
        %v1341 = vld [vmem:[%s957 + $0x14] sm:$0x1]
        %v1342 = vld [vmem:[%s957 + $0x18] sm:$0xe]
        %v1343 = vld [vmem:[%s957 + $0x1c] sm:$0xf]
        %v1344 = vld [vmem:[%s957 + $0x20] sm:$0x1]
        %v1345 = vld [vmem:[%s957 + $0x24] sm:$0xe]
        %v1346 = vld [vmem:[%s957 + $0x28] sm:$0xf]
        %v1347 = vld [vmem:[%s957 + $0x2c] sm:$0x1]
        %v1348 = vld [vmem:[%s957 + $0x30] sm:$0xe]
        %v1349 = vld [vmem:[%s957 + $0x34] sm:$0xf]
        %v1350 = vld [vmem:[%s957 + $0x38] sm:$0x1]
        %v1351 = vld [vmem:[%s957 + $0x3c] sm:$0xe]
        %v1352 = vld [vmem:[%s957 + $0x40] sm:$0xf]
        %v1353 = vld [vmem:[%s957 + $0x44] sm:$0x1]
        %v1354 = vld [vmem:[%s957 + $0x48] sm:$0xe]
        %v1355 = vld [vmem:[%s957 + $0x4c] sm:$0xf]
        %v1356 = vld [vmem:[%s957 + $0x50] sm:$0x1]
        %v1357 = vld [vmem:[%s957 + $0x54] sm:$0xe]
        %v1358 = vld [vmem:[%s957 + $0x58] sm:$0xf]
        %v1359 = vld [vmem:[%s957 + $0x5c] sm:$0x1]
        %v1384 = vrot.slane %v1336, 5
        %v1385 = vrot.slane %v1384, 4
        %v1386 = vrot.slane %v1337, 5
        %v1387 = vsel %vm835, %v1385, %v1386
        %v1388 = vrot.slane %v1386, 4
        %v1389 = vrot.slane %v1338, 5
        %v1390 = vsel %vm835, %v1388, %v1389
        %v1391 = vrot.slane %v1339, 5
        %v1392 = vrot.slane %v1391, 4
        %v1393 = vrot.slane %v1340, 5
        %v1394 = vsel %vm835, %v1392, %v1393
        %v1395 = vrot.slane %v1393, 4
        %v1396 = vrot.slane %v1341, 5
        %v1397 = vsel %vm835, %v1395, %v1396
        %v1398 = vrot.slane %v1342, 5
        %v1399 = vrot.slane %v1398, 4
        %v1400 = vrot.slane %v1343, 5
        %v1401 = vsel %vm835, %v1399, %v1400
        %v1402 = vrot.slane %v1400, 4
        %v1403 = vrot.slane %v1344, 5
        %v1404 = vsel %vm835, %v1402, %v1403
        %v1405 = vrot.slane %v1345, 5
        %v1406 = vrot.slane %v1405, 4
        %v1407 = vrot.slane %v1346, 5
        %v1408 = vsel %vm835, %v1406, %v1407
        %v1409 = vrot.slane %v1407, 4
        %v1410 = vrot.slane %v1347, 5
        %v1411 = vsel %vm835, %v1409, %v1410
        %v1412 = vrot.slane %v1348, 5
        %v1413 = vrot.slane %v1412, 4
        %v1414 = vrot.slane %v1349, 5
        %v1415 = vsel %vm835, %v1413, %v1414
        %v1416 = vrot.slane %v1414, 4
        %v1417 = vrot.slane %v1350, 5
        %v1418 = vsel %vm835, %v1416, %v1417
        %v1419 = vrot.slane %v1351, 5
        %v1420 = vrot.slane %v1419, 4
        %v1421 = vrot.slane %v1352, 5
        %v1422 = vsel %vm835, %v1420, %v1421
        %v1423 = vrot.slane %v1421, 4
        %v1424 = vrot.slane %v1353, 5
        %v1425 = vsel %vm835, %v1423, %v1424
        %v1426 = vrot.slane %v1354, 5
        %v1427 = vrot.slane %v1426, 4
        %v1428 = vrot.slane %v1355, 5
        %v1429 = vsel %vm835, %v1427, %v1428
        %v1430 = vrot.slane %v1428, 4
        %v1431 = vrot.slane %v1356, 5
        %v1432 = vsel %vm835, %v1430, %v1431
        %v1433 = vrot.slane %v1357, 5
        %v1434 = vrot.slane %v1433, 4
        %v1435 = vrot.slane %v1358, 5
        %v1436 = vsel %vm835, %v1434, %v1435
        %v1437 = vrot.slane %v1435, 4
        %v1438 = vrot.slane %v1359, 5
        %v1439 = vsel %vm835, %v1437, %v1438
        %1440 = vrot.lane.b32.xlu0 %v1387, 80
        %v1441 = vpop.permute.xlu0 %1440
        %1442 = vrot.lane.b32.xlu0 %v1390, 80
        %v1443 = vpop.permute.xlu0 %1442
        %1444 = vrot.lane.b32.xlu0 %v1394, 80
        %v1445 = vpop.permute.xlu0 %1444
        %1446 = vrot.lane.b32.xlu0 %v1397, 80
        %v1447 = vpop.permute.xlu0 %1446
        %1448 = vrot.lane.b32.xlu0 %v1401, 80
        %v1449 = vpop.permute.xlu0 %1448
        %1450 = vrot.lane.b32.xlu0 %v1404, 80
        %v1451 = vpop.permute.xlu0 %1450
        %1452 = vrot.lane.b32.xlu0 %v1408, 80
        %v1453 = vpop.permute.xlu0 %1452
        %1454 = vrot.lane.b32.xlu0 %v1411, 80
        %v1455 = vpop.permute.xlu0 %1454
        %1456 = vrot.lane.b32.xlu0 %v1415, 80
        %v1457 = vpop.permute.xlu0 %1456
        %1458 = vrot.lane.b32.xlu0 %v1418, 80
        %v1459 = vpop.permute.xlu0 %1458
        %1460 = vrot.lane.b32.xlu0 %v1422, 80
        %v1461 = vpop.permute.xlu0 %1460
        %1462 = vrot.lane.b32.xlu0 %v1425, 80
        %v1463 = vpop.permute.xlu0 %1462
        %1464 = vrot.lane.b32.xlu0 %v1429, 80
        %v1465 = vpop.permute.xlu0 %1464
        %1466 = vrot.lane.b32.xlu0 %v1432, 80
        %v1467 = vpop.permute.xlu0 %1466
        %1468 = vrot.lane.b32.xlu0 %v1436, 80
        %v1469 = vpop.permute.xlu0 %1468
        %1470 = vrot.lane.b32.xlu0 %v1439, 80
        %v1471 = vpop.permute.xlu0 %1470
        %vm1488 = vcmask 781952
        %1489 = vst.msk [vmem:[#allocation3] sm:$0xf] %vm1488, %v1441
        %1490 = vst.msk [vmem:[#allocation3 + $0x8] sm:$0xf] %vm1488, %v1443
        %1491 = vst.msk [vmem:[#allocation3 + $0x10] sm:$0xf] %vm1488, %v1445
        %1492 = vst.msk [vmem:[#allocation3 + $0x18] sm:$0xf] %vm1488, %v1447
        %1493 = vst.msk [vmem:[#allocation3 + $0x20] sm:$0xf] %vm1488, %v1449
        %1494 = vst.msk [vmem:[#allocation3 + $0x28] sm:$0xf] %vm1488, %v1451
        %1495 = vst.msk [vmem:[#allocation3 + $0x30] sm:$0xf] %vm1488, %v1453
        %1496 = vst.msk [vmem:[#allocation3 + $0x38] sm:$0xf] %vm1488, %v1455
        %1497 = vst.msk [vmem:[#allocation3 + $0x40] sm:$0xf] %vm1488, %v1457
        %1498 = vst.msk [vmem:[#allocation3 + $0x48] sm:$0xf] %vm1488, %v1459
        %1499 = vst.msk [vmem:[#allocation3 + $0x50] sm:$0xf] %vm1488, %v1461
        %1500 = vst.msk [vmem:[#allocation3 + $0x58] sm:$0xf] %vm1488, %v1463
        %1501 = vst.msk [vmem:[#allocation3 + $0x60] sm:$0xf] %vm1488, %v1465
        %1502 = vst.msk [vmem:[#allocation3 + $0x68] sm:$0xf] %vm1488, %v1467
        %1503 = vst.msk [vmem:[#allocation3 + $0x70] sm:$0xf] %vm1488, %v1469
        %1504 = vst.msk [vmem:[#allocation3 + $0x78] sm:$0xf] %vm1488, %v1471
        %s1505 = scalar_lea.vmem [#allocation2], 24
        %v1506 = vld [vmem:[%s1505] sm:$0xf]
        %v1507 = vld [vmem:[%s1505 + $0x4] sm:$0xf]
        %v1508 = vld [vmem:[%s1505 + $0xc] sm:$0xf]
        %v1509 = vld [vmem:[%s1505 + $0x10] sm:$0xf]
        %v1510 = vld [vmem:[%s1505 + $0x18] sm:$0xf]
        %v1511 = vld [vmem:[%s1505 + $0x1c] sm:$0xf]
        %v1512 = vld [vmem:[%s1505 + $0x24] sm:$0xf]
        %v1513 = vld [vmem:[%s1505 + $0x28] sm:$0xf]
        %v1514 = vld [vmem:[%s1505 + $0x30] sm:$0xf]
        %v1515 = vld [vmem:[%s1505 + $0x34] sm:$0xf]
        %v1516 = vld [vmem:[%s1505 + $0x3c] sm:$0xf]
        %v1517 = vld [vmem:[%s1505 + $0x40] sm:$0xf]
        %v1518 = vld [vmem:[%s1505 + $0x48] sm:$0xf]
        %v1519 = vld [vmem:[%s1505 + $0x4c] sm:$0xf]
        %v1520 = vld [vmem:[%s1505 + $0x54] sm:$0xf]
        %v1521 = vld [vmem:[%s1505 + $0x58] sm:$0xf]
        %1538 = vrot.lane.b32.xlu0 %v1506, 96
        %v1539 = vpop.permute.xlu0 %1538
        %1540 = vrot.lane.b32.xlu0 %v1507, 96
        %v1541 = vpop.permute.xlu0 %1540
        %1542 = vrot.lane.b32.xlu0 %v1508, 96
        %v1543 = vpop.permute.xlu0 %1542
        %1544 = vrot.lane.b32.xlu0 %v1509, 96
        %v1545 = vpop.permute.xlu0 %1544
        %1546 = vrot.lane.b32.xlu0 %v1510, 96
        %v1547 = vpop.permute.xlu0 %1546
        %1548 = vrot.lane.b32.xlu0 %v1511, 96
        %v1549 = vpop.permute.xlu0 %1548
        %1550 = vrot.lane.b32.xlu0 %v1512, 96
        %v1551 = vpop.permute.xlu0 %1550
        %1552 = vrot.lane.b32.xlu0 %v1513, 96
        %v1553 = vpop.permute.xlu0 %1552
        %1554 = vrot.lane.b32.xlu0 %v1514, 96
        %v1555 = vpop.permute.xlu0 %1554
        %1556 = vrot.lane.b32.xlu0 %v1515, 96
        %v1557 = vpop.permute.xlu0 %1556
        %1558 = vrot.lane.b32.xlu0 %v1516, 96
        %v1559 = vpop.permute.xlu0 %1558
        %1560 = vrot.lane.b32.xlu0 %v1517, 96
        %v1561 = vpop.permute.xlu0 %1560
        %1562 = vrot.lane.b32.xlu0 %v1518, 96
        %v1563 = vpop.permute.xlu0 %1562
        %1564 = vrot.lane.b32.xlu0 %v1519, 96
        %v1565 = vpop.permute.xlu0 %1564
        %1566 = vrot.lane.b32.xlu0 %v1520, 96
        %v1567 = vpop.permute.xlu0 %1566
        %1568 = vrot.lane.b32.xlu0 %v1521, 96
        %v1569 = vpop.permute.xlu0 %1568
        %vm1586 = vcmask 913152
        %1587 = vst.msk [vmem:[#allocation3] sm:$0xf] %vm1586, %v1539
        %1588 = vst.msk [vmem:[#allocation3 + $0x8] sm:$0xf] %vm1586, %v1541
        %1589 = vst.msk [vmem:[#allocation3 + $0x10] sm:$0xf] %vm1586, %v1543
        %1590 = vst.msk [vmem:[#allocation3 + $0x18] sm:$0xf] %vm1586, %v1545
        %1591 = vst.msk [vmem:[#allocation3 + $0x20] sm:$0xf] %vm1586, %v1547
        %1592 = vst.msk [vmem:[#allocation3 + $0x28] sm:$0xf] %vm1586, %v1549
        %1593 = vst.msk [vmem:[#allocation3 + $0x30] sm:$0xf] %vm1586, %v1551
        %1594 = vst.msk [vmem:[#allocation3 + $0x38] sm:$0xf] %vm1586, %v1553
        %1595 = vst.msk [vmem:[#allocation3 + $0x40] sm:$0xf] %vm1586, %v1555
        %1596 = vst.msk [vmem:[#allocation3 + $0x48] sm:$0xf] %vm1586, %v1557
        %1597 = vst.msk [vmem:[#allocation3 + $0x50] sm:$0xf] %vm1586, %v1559
        %1598 = vst.msk [vmem:[#allocation3 + $0x58] sm:$0xf] %vm1586, %v1561
        %1599 = vst.msk [vmem:[#allocation3 + $0x60] sm:$0xf] %vm1586, %v1563
        %1600 = vst.msk [vmem:[#allocation3 + $0x68] sm:$0xf] %vm1586, %v1565
        %1601 = vst.msk [vmem:[#allocation3 + $0x70] sm:$0xf] %vm1586, %v1567
        %1602 = vst.msk [vmem:[#allocation3 + $0x78] sm:$0xf] %vm1586, %v1569
        %v1603 = vld [vmem:[%s1505] sm:$0xf]
        %v1604 = vld [vmem:[%s1505 + $0x4] sm:$0xf]
        %v1605 = vld [vmem:[%s1505 + $0x8] sm:$0x1]
        %v1606 = vld [vmem:[%s1505 + $0xc] sm:$0xf]
        %v1607 = vld [vmem:[%s1505 + $0x10] sm:$0xf]
        %v1608 = vld [vmem:[%s1505 + $0x14] sm:$0x1]
        %v1609 = vld [vmem:[%s1505 + $0x18] sm:$0xf]
        %v1610 = vld [vmem:[%s1505 + $0x1c] sm:$0xf]
        %v1611 = vld [vmem:[%s1505 + $0x20] sm:$0x1]
        %v1612 = vld [vmem:[%s1505 + $0x24] sm:$0xf]
        %v1613 = vld [vmem:[%s1505 + $0x28] sm:$0xf]
        %v1614 = vld [vmem:[%s1505 + $0x2c] sm:$0x1]
        %v1615 = vld [vmem:[%s1505 + $0x30] sm:$0xf]
        %v1616 = vld [vmem:[%s1505 + $0x34] sm:$0xf]
        %v1617 = vld [vmem:[%s1505 + $0x38] sm:$0x1]
        %v1618 = vld [vmem:[%s1505 + $0x3c] sm:$0xf]
        %v1619 = vld [vmem:[%s1505 + $0x40] sm:$0xf]
        %v1620 = vld [vmem:[%s1505 + $0x44] sm:$0x1]
        %v1621 = vld [vmem:[%s1505 + $0x48] sm:$0xf]
        %v1622 = vld [vmem:[%s1505 + $0x4c] sm:$0xf]
        %v1623 = vld [vmem:[%s1505 + $0x50] sm:$0x1]
        %v1624 = vld [vmem:[%s1505 + $0x54] sm:$0xf]
        %v1625 = vld [vmem:[%s1505 + $0x58] sm:$0xf]
        %v1626 = vld [vmem:[%s1505 + $0x5c] sm:$0x1]
        %v1628 = vshrl.u32 %v1603, 16
        %v1630 = vrot.slane %v1628, 4
        %v1631 = vshll.u32 %v1603, 16
        %v1633 = vrot.slane %v1631, 5
        %v1634 = vor.u32 %v1630, %v1633
        %v1635 = vrot.slane %v1634, 4
        %v1637 = vshll.u32 %v1604, 16
        %v1639 = vrot.slane %v1637, 5
        %v1640 = vsel %vm527, %v1635, %v1639
        %v1641 = vshrl.u32 %v1604, 16
        %v1643 = vrot.slane %v1641, 4
        %v1644 = vor.u32 %v1643, %v1639
        %v1645 = vrot.slane %v1644, 4
        %v1647 = vshll.u32 %v1605, 16
        %v1649 = vrot.slane %v1647, 5
        %v1650 = vsel %vm527, %v1645, %v1649
        %v1652 = vshrl.u32 %v1606, 16
        %v1654 = vrot.slane %v1652, 4
        %v1655 = vshll.u32 %v1606, 16
        %v1657 = vrot.slane %v1655, 5
        %v1658 = vor.u32 %v1654, %v1657
        %v1659 = vrot.slane %v1658, 4
        %v1661 = vshll.u32 %v1607, 16
        %v1663 = vrot.slane %v1661, 5
        %v1664 = vsel %vm527, %v1659, %v1663
        %v1665 = vshrl.u32 %v1607, 16
        %v1667 = vrot.slane %v1665, 4
        %v1668 = vor.u32 %v1667, %v1663
        %v1669 = vrot.slane %v1668, 4
        %v1671 = vshll.u32 %v1608, 16
        %v1673 = vrot.slane %v1671, 5
        %v1674 = vsel %vm527, %v1669, %v1673
        %v1676 = vshrl.u32 %v1609, 16
        %v1678 = vrot.slane %v1676, 4
        %v1679 = vshll.u32 %v1609, 16
        %v1681 = vrot.slane %v1679, 5
        %v1682 = vor.u32 %v1678, %v1681
        %v1683 = vrot.slane %v1682, 4
        %v1685 = vshll.u32 %v1610, 16
        %v1687 = vrot.slane %v1685, 5
        %v1688 = vsel %vm527, %v1683, %v1687
        %v1689 = vshrl.u32 %v1610, 16
        %v1691 = vrot.slane %v1689, 4
        %v1692 = vor.u32 %v1691, %v1687
        %v1693 = vrot.slane %v1692, 4
        %v1695 = vshll.u32 %v1611, 16
        %v1697 = vrot.slane %v1695, 5
        %v1698 = vsel %vm527, %v1693, %v1697
        %v1700 = vshrl.u32 %v1612, 16
        %v1702 = vrot.slane %v1700, 4
        %v1703 = vshll.u32 %v1612, 16
        %v1705 = vrot.slane %v1703, 5
        %v1706 = vor.u32 %v1702, %v1705
        %v1707 = vrot.slane %v1706, 4
        %v1709 = vshll.u32 %v1613, 16
        %v1711 = vrot.slane %v1709, 5
        %v1712 = vsel %vm527, %v1707, %v1711
        %v1713 = vshrl.u32 %v1613, 16
        %v1715 = vrot.slane %v1713, 4
        %v1716 = vor.u32 %v1715, %v1711
        %v1717 = vrot.slane %v1716, 4
        %v1719 = vshll.u32 %v1614, 16
        %v1721 = vrot.slane %v1719, 5
        %v1722 = vsel %vm527, %v1717, %v1721
        %v1724 = vshrl.u32 %v1615, 16
        %v1726 = vrot.slane %v1724, 4
        %v1727 = vshll.u32 %v1615, 16
        %v1729 = vrot.slane %v1727, 5
        %v1730 = vor.u32 %v1726, %v1729
        %v1731 = vrot.slane %v1730, 4
        %v1733 = vshll.u32 %v1616, 16
        %v1735 = vrot.slane %v1733, 5
        %v1736 = vsel %vm527, %v1731, %v1735
        %v1737 = vshrl.u32 %v1616, 16
        %v1739 = vrot.slane %v1737, 4
        %v1740 = vor.u32 %v1739, %v1735
        %v1741 = vrot.slane %v1740, 4
        %v1743 = vshll.u32 %v1617, 16
        %v1745 = vrot.slane %v1743, 5
        %v1746 = vsel %vm527, %v1741, %v1745
        %v1748 = vshrl.u32 %v1618, 16
        %v1750 = vrot.slane %v1748, 4
        %v1751 = vshll.u32 %v1618, 16
        %v1753 = vrot.slane %v1751, 5
        %v1754 = vor.u32 %v1750, %v1753
        %v1755 = vrot.slane %v1754, 4
        %v1757 = vshll.u32 %v1619, 16
        %v1759 = vrot.slane %v1757, 5
        %v1760 = vsel %vm527, %v1755, %v1759
        %v1761 = vshrl.u32 %v1619, 16
        %v1763 = vrot.slane %v1761, 4
        %v1764 = vor.u32 %v1763, %v1759
        %v1765 = vrot.slane %v1764, 4
        %v1767 = vshll.u32 %v1620, 16
        %v1769 = vrot.slane %v1767, 5
        %v1770 = vsel %vm527, %v1765, %v1769
        %v1772 = vshrl.u32 %v1621, 16
        %v1774 = vrot.slane %v1772, 4
        %v1775 = vshll.u32 %v1621, 16
        %v1777 = vrot.slane %v1775, 5
        %v1778 = vor.u32 %v1774, %v1777
        %v1779 = vrot.slane %v1778, 4
        %v1781 = vshll.u32 %v1622, 16
        %v1783 = vrot.slane %v1781, 5
        %v1784 = vsel %vm527, %v1779, %v1783
        %v1785 = vshrl.u32 %v1622, 16
        %v1787 = vrot.slane %v1785, 4
        %v1788 = vor.u32 %v1787, %v1783
        %v1789 = vrot.slane %v1788, 4
        %v1791 = vshll.u32 %v1623, 16
        %v1793 = vrot.slane %v1791, 5
        %v1794 = vsel %vm527, %v1789, %v1793
        %v1796 = vshrl.u32 %v1624, 16
        %v1798 = vrot.slane %v1796, 4
        %v1799 = vshll.u32 %v1624, 16
        %v1801 = vrot.slane %v1799, 5
        %v1802 = vor.u32 %v1798, %v1801
        %v1803 = vrot.slane %v1802, 4
        %v1805 = vshll.u32 %v1625, 16
        %v1807 = vrot.slane %v1805, 5
        %v1808 = vsel %vm527, %v1803, %v1807
        %v1809 = vshrl.u32 %v1625, 16
        %v1811 = vrot.slane %v1809, 4
        %v1812 = vor.u32 %v1811, %v1807
        %v1813 = vrot.slane %v1812, 4
        %v1815 = vshll.u32 %v1626, 16
        %v1817 = vrot.slane %v1815, 5
        %v1818 = vsel %vm527, %v1813, %v1817
        %1819 = vrot.lane.b32.xlu0 %v1640, 112
        %v1820 = vpop.permute.xlu0 %1819
        %1821 = vrot.lane.b32.xlu0 %v1650, 112
        %v1822 = vpop.permute.xlu0 %1821
        %1823 = vrot.lane.b32.xlu0 %v1664, 112
        %v1824 = vpop.permute.xlu0 %1823
        %1825 = vrot.lane.b32.xlu0 %v1674, 112
        %v1826 = vpop.permute.xlu0 %1825
        %1827 = vrot.lane.b32.xlu0 %v1688, 112
        %v1828 = vpop.permute.xlu0 %1827
        %1829 = vrot.lane.b32.xlu0 %v1698, 112
        %v1830 = vpop.permute.xlu0 %1829
        %1831 = vrot.lane.b32.xlu0 %v1712, 112
        %v1832 = vpop.permute.xlu0 %1831
        %1833 = vrot.lane.b32.xlu0 %v1722, 112
        %v1834 = vpop.permute.xlu0 %1833
        %1835 = vrot.lane.b32.xlu0 %v1736, 112
        %v1836 = vpop.permute.xlu0 %1835
        %1837 = vrot.lane.b32.xlu0 %v1746, 112
        %v1838 = vpop.permute.xlu0 %1837
        %1839 = vrot.lane.b32.xlu0 %v1760, 112
        %v1840 = vpop.permute.xlu0 %1839
        %1841 = vrot.lane.b32.xlu0 %v1770, 112
        %v1842 = vpop.permute.xlu0 %1841
        %1843 = vrot.lane.b32.xlu0 %v1784, 112
        %v1844 = vpop.permute.xlu0 %1843
        %1845 = vrot.lane.b32.xlu0 %v1794, 112
        %v1846 = vpop.permute.xlu0 %1845
        %1847 = vrot.lane.b32.xlu0 %v1808, 112
        %v1848 = vpop.permute.xlu0 %1847
        %1849 = vrot.lane.b32.xlu0 %v1818, 112
        %v1850 = vpop.permute.xlu0 %1849
        %vm1867 = vcmask 1044352
        %1868 = vst.msk [vmem:[#allocation3] sm:$0xf] %vm1867, %v1820
        %1869 = vst.msk [vmem:[#allocation3 + $0x8] sm:$0xf] %vm1867, %v1822
        %1870 = vst.msk [vmem:[#allocation3 + $0x10] sm:$0xf] %vm1867, %v1824
        %1871 = vst.msk [vmem:[#allocation3 + $0x18] sm:$0xf] %vm1867, %v1826
        %1872 = vst.msk [vmem:[#allocation3 + $0x20] sm:$0xf] %vm1867, %v1828
        %1873 = vst.msk [vmem:[#allocation3 + $0x28] sm:$0xf] %vm1867, %v1830
        %1874 = vst.msk [vmem:[#allocation3 + $0x30] sm:$0xf] %vm1867, %v1832
        %1875 = vst.msk [vmem:[#allocation3 + $0x38] sm:$0xf] %vm1867, %v1834
        %1876 = vst.msk [vmem:[#allocation3 + $0x40] sm:$0xf] %vm1867, %v1836
        %1877 = vst.msk [vmem:[#allocation3 + $0x48] sm:$0xf] %vm1867, %v1838
        %1878 = vst.msk [vmem:[#allocation3 + $0x50] sm:$0xf] %vm1867, %v1840
        %1879 = vst.msk [vmem:[#allocation3 + $0x58] sm:$0xf] %vm1867, %v1842
        %1880 = vst.msk [vmem:[#allocation3 + $0x60] sm:$0xf] %vm1867, %v1844
        %1881 = vst.msk [vmem:[#allocation3 + $0x68] sm:$0xf] %vm1867, %v1846
        %1882 = vst.msk [vmem:[#allocation3 + $0x70] sm:$0xf] %vm1867, %v1848
        %1883 = vst.msk [vmem:[#allocation3 + $0x78] sm:$0xf] %vm1867, %v1850
        %v1884 = vld [vmem:[%s1505] sm:$0xe]
        %v1885 = vld [vmem:[%s1505 + $0x4] sm:$0xf]
        %v1886 = vld [vmem:[%s1505 + $0x8] sm:$0x1]
        %v1887 = vld [vmem:[%s1505 + $0xc] sm:$0xe]
        %v1888 = vld [vmem:[%s1505 + $0x10] sm:$0xf]
        %v1889 = vld [vmem:[%s1505 + $0x14] sm:$0x1]
        %v1890 = vld [vmem:[%s1505 + $0x18] sm:$0xe]
        %v1891 = vld [vmem:[%s1505 + $0x1c] sm:$0xf]
        %v1892 = vld [vmem:[%s1505 + $0x20] sm:$0x1]
        %v1893 = vld [vmem:[%s1505 + $0x24] sm:$0xe]
        %v1894 = vld [vmem:[%s1505 + $0x28] sm:$0xf]
        %v1895 = vld [vmem:[%s1505 + $0x2c] sm:$0x1]
        %v1896 = vld [vmem:[%s1505 + $0x30] sm:$0xe]
        %v1897 = vld [vmem:[%s1505 + $0x34] sm:$0xf]
        %v1898 = vld [vmem:[%s1505 + $0x38] sm:$0x1]
        %v1899 = vld [vmem:[%s1505 + $0x3c] sm:$0xe]
        %v1900 = vld [vmem:[%s1505 + $0x40] sm:$0xf]
        %v1901 = vld [vmem:[%s1505 + $0x44] sm:$0x1]
        %v1902 = vld [vmem:[%s1505 + $0x48] sm:$0xe]
        %v1903 = vld [vmem:[%s1505 + $0x4c] sm:$0xf]
        %v1904 = vld [vmem:[%s1505 + $0x50] sm:$0x1]
        %v1905 = vld [vmem:[%s1505 + $0x54] sm:$0xe]
        %v1906 = vld [vmem:[%s1505 + $0x58] sm:$0xf]
        %v1907 = vld [vmem:[%s1505 + $0x5c] sm:$0x1]
        %v1932 = vrot.slane %v1884, 5
        %v1933 = vrot.slane %v1932, 4
        %v1934 = vrot.slane %v1885, 5
        %v1935 = vsel %vm835, %v1933, %v1934
        %v1936 = vrot.slane %v1934, 4
        %v1937 = vrot.slane %v1886, 5
        %v1938 = vsel %vm835, %v1936, %v1937
        %v1939 = vrot.slane %v1887, 5
        %v1940 = vrot.slane %v1939, 4
        %v1941 = vrot.slane %v1888, 5
        %v1942 = vsel %vm835, %v1940, %v1941
        %v1943 = vrot.slane %v1941, 4
        %v1944 = vrot.slane %v1889, 5
        %v1945 = vsel %vm835, %v1943, %v1944
        %v1946 = vrot.slane %v1890, 5
        %v1947 = vrot.slane %v1946, 4
        %v1948 = vrot.slane %v1891, 5
        %v1949 = vsel %vm835, %v1947, %v1948
        %v1950 = vrot.slane %v1948, 4
        %v1951 = vrot.slane %v1892, 5
        %v1952 = vsel %vm835, %v1950, %v1951
        %v1953 = vrot.slane %v1893, 5
        %v1954 = vrot.slane %v1953, 4
        %v1955 = vrot.slane %v1894, 5
        %v1956 = vsel %vm835, %v1954, %v1955
        %v1957 = vrot.slane %v1955, 4
        %v1958 = vrot.slane %v1895, 5
        %v1959 = vsel %vm835, %v1957, %v1958
        %v1960 = vrot.slane %v1896, 5
        %v1961 = vrot.slane %v1960, 4
        %v1962 = vrot.slane %v1897, 5
        %v1963 = vsel %vm835, %v1961, %v1962
        %v1964 = vrot.slane %v1962, 4
        %v1965 = vrot.slane %v1898, 5
        %v1966 = vsel %vm835, %v1964, %v1965
        %v1967 = vrot.slane %v1899, 5
        %v1968 = vrot.slane %v1967, 4
        %v1969 = vrot.slane %v1900, 5
        %v1970 = vsel %vm835, %v1968, %v1969
        %v1971 = vrot.slane %v1969, 4
        %v1972 = vrot.slane %v1901, 5
        %v1973 = vsel %vm835, %v1971, %v1972
        %v1974 = vrot.slane %v1902, 5
        %v1975 = vrot.slane %v1974, 4
        %v1976 = vrot.slane %v1903, 5
        %v1977 = vsel %vm835, %v1975, %v1976
        %v1978 = vrot.slane %v1976, 4
        %v1979 = vrot.slane %v1904, 5
        %v1980 = vsel %vm835, %v1978, %v1979
        %v1981 = vrot.slane %v1905, 5
        %v1982 = vrot.slane %v1981, 4
        %v1983 = vrot.slane %v1906, 5
        %v1984 = vsel %vm835, %v1982, %v1983
        %v1985 = vrot.slane %v1983, 4
        %v1986 = vrot.slane %v1907, 5
        %v1987 = vsel %vm835, %v1985, %v1986
        %2004 = vst.msk [vmem:[#allocation3 + $0x4] sm:$0xf] %vm430, %v1935
        %2005 = vst.msk [vmem:[#allocation3 + $0xc] sm:$0xf] %vm430, %v1938
        %2006 = vst.msk [vmem:[#allocation3 + $0x14] sm:$0xf] %vm430, %v1942
        %2007 = vst.msk [vmem:[#allocation3 + $0x1c] sm:$0xf] %vm430, %v1945
        %2008 = vst.msk [vmem:[#allocation3 + $0x24] sm:$0xf] %vm430, %v1949
        %2009 = vst.msk [vmem:[#allocation3 + $0x2c] sm:$0xf] %vm430, %v1952
        %2010 = vst.msk [vmem:[#allocation3 + $0x34] sm:$0xf] %vm430, %v1956
        %2011 = vst.msk [vmem:[#allocation3 + $0x3c] sm:$0xf] %vm430, %v1959
        %2012 = vst.msk [vmem:[#allocation3 + $0x44] sm:$0xf] %vm430, %v1963
        %2013 = vst.msk [vmem:[#allocation3 + $0x4c] sm:$0xf] %vm430, %v1966
        %2014 = vst.msk [vmem:[#allocation3 + $0x54] sm:$0xf] %vm430, %v1970
        %2015 = vst.msk [vmem:[#allocation3 + $0x5c] sm:$0xf] %vm430, %v1973
        %2016 = vst.msk [vmem:[#allocation3 + $0x64] sm:$0xf] %vm430, %v1977
        %2017 = vst.msk [vmem:[#allocation3 + $0x6c] sm:$0xf] %vm430, %v1980
        %2018 = vst.msk [vmem:[#allocation3 + $0x74] sm:$0xf] %vm430, %v1984
        %2019 = vst.msk [vmem:[#allocation3 + $0x7c] sm:$0xf] %vm430, %v1987
        %v2020 = vld [vmem:[#allocation3] sm:$0xff]
        %v2021 = vld [vmem:[#allocation3 + $0x8] sm:$0xff]
        %v2022 = vld [vmem:[#allocation3 + $0x10] sm:$0xff]
        %v2023 = vld [vmem:[#allocation3 + $0x18] sm:$0xff]
        %v2024 = vld [vmem:[#allocation3 + $0x20] sm:$0xff]
        %v2025 = vld [vmem:[#allocation3 + $0x28] sm:$0xff]
        %v2026 = vld [vmem:[#allocation3 + $0x30] sm:$0xff]
        %v2027 = vld [vmem:[#allocation3 + $0x38] sm:$0xff]
        %v2028 = vld [vmem:[#allocation3 + $0x40] sm:$0xff]
        %v2029 = vld [vmem:[#allocation3 + $0x48] sm:$0xff]
        %v2030 = vld [vmem:[#allocation3 + $0x50] sm:$0xff]
        %v2031 = vld [vmem:[#allocation3 + $0x58] sm:$0xff]
        %v2032 = vld [vmem:[#allocation3 + $0x60] sm:$0xff]
        %v2033 = vld [vmem:[#allocation3 + $0x68] sm:$0xff]
        %v2034 = vld [vmem:[#allocation3 + $0x70] sm:$0xff]
        %v2035 = vld [vmem:[#allocation3 + $0x78] sm:$0xff]
        %v2036 = vld [vmem:[%s2] sm:$0xf]
        %v2037 = vld [vmem:[%s2 + $0x4] sm:$0xf]
        %v2038 = vld [vmem:[%s2 + $0x8] sm:$0xf]
        %v2039 = vld [vmem:[%s2 + $0xc] sm:$0xf]
        %v2040 = vld [vmem:[%s2 + $0x10] sm:$0xf]
        %v2041 = vld [vmem:[%s2 + $0x14] sm:$0xf]
        %v2042 = vld [vmem:[%s2 + $0x18] sm:$0xf]
        %v2043 = vld [vmem:[%s2 + $0x1c] sm:$0xf]
        %v2044 = vld [vmem:[%s2 + $0x20] sm:$0xf]
        %v2045 = vld [vmem:[%s2 + $0x24] sm:$0xf]
        %v2046 = vld [vmem:[%s2 + $0x28] sm:$0xf]
        %v2047 = vld [vmem:[%s2 + $0x2c] sm:$0xf]
        %v2048 = vld [vmem:[%s2 + $0x30] sm:$0xf]
        %v2049 = vld [vmem:[%s2 + $0x34] sm:$0xf]
        %v2050 = vld [vmem:[%s2 + $0x38] sm:$0xf]
        %v2051 = vld [vmem:[%s2 + $0x3c] sm:$0xf]
        %v2052 = vld [vmem:[%s2 + $0x40] sm:$0xf]
        %v2053 = vld [vmem:[%s2 + $0x44] sm:$0xf]
        %v2054 = vld [vmem:[%s3] sm:$0x1]
        %v2056 = vperm.slane %v2054, 0
        %v2074 = vunpack.c.l.b16 %v2020
        %v2075 = vunpack.c.h.b16 %v2020
        %v2076 = vunpack.c.l.b16 %v2021
        %v2077 = vunpack.c.h.b16 %v2021
        %v2078 = vunpack.c.l.b16 %v2022
        %v2079 = vunpack.c.h.b16 %v2022
        %v2080 = vunpack.c.l.b16 %v2023
        %v2081 = vunpack.c.h.b16 %v2023
        %v2082 = vunpack.c.l.b16 %v2024
        %v2083 = vunpack.c.h.b16 %v2024
        %v2084 = vunpack.c.l.b16 %v2025
        %v2085 = vunpack.c.h.b16 %v2025
        %v2086 = vunpack.c.l.b16 %v2026
        %v2087 = vunpack.c.h.b16 %v2026
        %v2088 = vunpack.c.l.b16 %v2027
        %v2089 = vunpack.c.h.b16 %v2027
        %v2090 = vunpack.c.l.b16 %v2028
        %v2091 = vunpack.c.h.b16 %v2028
        %v2092 = vunpack.c.l.b16 %v2029
        %v2093 = vunpack.c.h.b16 %v2029
        %v2094 = vunpack.c.l.b16 %v2030
        %v2095 = vunpack.c.h.b16 %v2030
        %v2096 = vunpack.c.l.b16 %v2031
        %v2097 = vunpack.c.h.b16 %v2031
        %v2098 = vunpack.c.l.b16 %v2032
        %v2099 = vunpack.c.h.b16 %v2032
        %v2100 = vunpack.c.l.b16 %v2033
        %v2101 = vunpack.c.h.b16 %v2033
        %v2102 = vunpack.c.l.b16 %v2034
        %v2103 = vunpack.c.h.b16 %v2034
        %v2104 = vunpack.c.l.b16 %v2035
        %v2105 = vunpack.c.h.b16 %v2035
        %v2106 = vpack.c.b16 %v2076, %v2074
        %v2107 = vpack.c.b16 %v2077, %v2075
        %v2108 = vpack.c.b16 %v2080, %v2078
        %v2109 = vpack.c.b16 %v2081, %v2079
        %v2110 = vpack.c.b16 %v2084, %v2082
        %v2111 = vpack.c.b16 %v2085, %v2083
        %v2112 = vpack.c.b16 %v2088, %v2086
        %v2113 = vpack.c.b16 %v2089, %v2087
        %v2114 = vpack.c.b16 %v2092, %v2090
        %v2115 = vpack.c.b16 %v2093, %v2091
        %v2116 = vpack.c.b16 %v2096, %v2094
        %v2117 = vpack.c.b16 %v2097, %v2095
        %v2118 = vpack.c.b16 %v2100, %v2098
        %v2119 = vpack.c.b16 %v2101, %v2099
        %v2120 = vpack.c.b16 %v2104, %v2102
        %v2121 = vpack.c.b16 %v2105, %v2103
        %v2148 = vunpack.c.l.b16 %v2036
        %v2149 = vunpack.c.l.b16 %v2037
        %v2150 = vunpack.c.l.b16 %v2038
        %v2151 = vunpack.c.l.b16 %v2039
        %v2152 = vunpack.c.l.b16 %v2040
        %v2153 = vunpack.c.l.b16 %v2041
        %v2154 = vunpack.c.l.b16 %v2042
        %v2155 = vunpack.c.l.b16 %v2043
        %v2156 = vunpack.c.l.b16 %v2044
        %v2157 = vunpack.c.l.b16 %v2045
        %v2158 = vunpack.c.l.b16 %v2046
        %v2159 = vunpack.c.l.b16 %v2047
        %v2160 = vunpack.c.l.b16 %v2048
        %v2161 = vunpack.c.l.b16 %v2049
        %v2162 = vunpack.c.l.b16 %v2050
        %v2163 = vunpack.c.l.b16 %v2051
        %v2164 = vunpack.c.l.b16 %v2052
        %v2165 = vunpack.c.l.b16 %v2053
        %v2166 = vpack.c.b16 %v2149, %v2148
        %v2167 = vpack.c.b16 %v2151, %v2150
        %v2168 = vpack.c.b16 %v2153, %v2152
        %v2169 = vpack.c.b16 %v2155, %v2154
        %v2170 = vpack.c.b16 %v2157, %v2156
        %v2171 = vpack.c.b16 %v2159, %v2158
        %v2172 = vpack.c.b16 %v2161, %v2160
        %v2173 = vpack.c.b16 %v2163, %v2162
        %v2174 = vpack.c.b16 %v2165, %v2164
        %vm2184 = vcmask 130048
        %v2186 = vsel %vm2184, %v2107, 0
        %v2189 = vsel %vm2184, %v2109, 0
        %v2192 = vsel %vm2184, %v2111, 0
        %v2195 = vsel %vm2184, %v2113, 0
        %v2198 = vsel %vm2184, %v2115, 0
        %v2201 = vsel %vm2184, %v2117, 0
        %v2204 = vsel %vm2184, %v2119, 0
        %v2207 = vsel %vm2184, %v2121, 0
        %2209 = vmatpush.bf16.msra.mxu0 %v2173
        %2210 = vmatpush.bf16.msra.mxu0 %v2172
        %2211 = vmatpush.bf16.msra.mxu0 %v2171
        %2212 = vmatpush.bf16.msra.mxu0 %v2170
        %2213 = vmatpush.bf16.msra.mxu0 %v2169
        %2214 = vmatpush.bf16.msra.mxu0 %v2168
        %2215 = vmatpush.bf16.msra.mxu0 %v2167
        %2216 = vmatpush.bf16.msra.mxu0 %v2166
        %2217 = vmatmul.bf16.gmra.mxu0 %v2106
        %v2218 = vpop.f32.mrf.mxu0
        %v2219 = vadd.f32 %v2056, %v2218
        %v2220 = vpop.f32.mrf.mxu0
        %v2221 = vadd.f32 %v2056, %v2220
        %2222 = vmatmul.bf16.gmra.mxu0 %v2108
        %v2223 = vpop.f32.mrf.mxu0
        %v2224 = vadd.f32 %v2056, %v2223
        %v2225 = vpop.f32.mrf.mxu0
        %v2226 = vadd.f32 %v2056, %v2225
        %2227 = vmatmul.bf16.gmra.mxu0 %v2110
        %v2228 = vpop.f32.mrf.mxu0
        %v2229 = vadd.f32 %v2056, %v2228
        %v2230 = vpop.f32.mrf.mxu0
        %v2231 = vadd.f32 %v2056, %v2230
        %2232 = vmatmul.bf16.gmra.mxu0 %v2112
        %v2233 = vpop.f32.mrf.mxu0
        %v2234 = vadd.f32 %v2056, %v2233
        %v2235 = vpop.f32.mrf.mxu0
        %v2236 = vadd.f32 %v2056, %v2235
        %2237 = vmatmul.bf16.gmra.mxu0 %v2114
        %v2238 = vpop.f32.mrf.mxu0
        %v2239 = vadd.f32 %v2056, %v2238
        %v2240 = vpop.f32.mrf.mxu0
        %v2241 = vadd.f32 %v2056, %v2240
        %2242 = vmatmul.bf16.gmra.mxu0 %v2116
        %v2243 = vpop.f32.mrf.mxu0
        %v2244 = vadd.f32 %v2056, %v2243
        %v2245 = vpop.f32.mrf.mxu0
        %v2246 = vadd.f32 %v2056, %v2245
        %2247 = vmatmul.bf16.gmra.mxu0 %v2118
        %v2248 = vpop.f32.mrf.mxu0
        %v2249 = vadd.f32 %v2056, %v2248
        %v2250 = vpop.f32.mrf.mxu0
        %v2251 = vadd.f32 %v2056, %v2250
        %2252 = vmatmul.bf16.gmra.mxu0 %v2120
        %v2253 = vpop.f32.mrf.mxu0
        %v2254 = vadd.f32 %v2056, %v2253
        %v2255 = vpop.f32.mrf.mxu0
        %v2256 = vadd.f32 %v2056, %v2255
        %2257 = vdwg.mxu0
        %2258 = vmatpush.bf16.msra.mxu0 0
        %2259 = vmatpush.bf16.msra.mxu0 0
        %2260 = vmatpush.bf16.msra.mxu0 0
        %2261 = vmatpush.bf16.msra.mxu0 0
        %2262 = vmatpush.bf16.msra.mxu0 0
        %2263 = vmatpush.bf16.msra.mxu0 0
        %2264 = vmatpush.bf16.msra.mxu0 0
        %2265 = vmatpush.bf16.msra.mxu0 %v2174
        %2266 = vmatmul.bf16.gmra.mxu0 %v2186
        %v2267 = vpop.f32.mrf.mxu0
        %v2268 = vadd.f32 %v2219, %v2267
        %v2269 = vpop.f32.mrf.mxu0
        %v2270 = vadd.f32 %v2221, %v2269
        %2271 = vmatmul.bf16.gmra.mxu0 %v2189
        %v2272 = vpop.f32.mrf.mxu0
        %v2273 = vadd.f32 %v2224, %v2272
        %v2274 = vpop.f32.mrf.mxu0
        %v2275 = vadd.f32 %v2226, %v2274
        %2276 = vmatmul.bf16.gmra.mxu0 %v2192
        %v2277 = vpop.f32.mrf.mxu0
        %v2278 = vadd.f32 %v2229, %v2277
        %v2279 = vpop.f32.mrf.mxu0
        %v2280 = vadd.f32 %v2231, %v2279
        %2281 = vmatmul.bf16.gmra.mxu0 %v2195
        %v2282 = vpop.f32.mrf.mxu0
        %v2283 = vadd.f32 %v2234, %v2282
        %v2284 = vpop.f32.mrf.mxu0
        %v2285 = vadd.f32 %v2236, %v2284
        %2286 = vmatmul.bf16.gmra.mxu0 %v2198
        %v2287 = vpop.f32.mrf.mxu0
        %v2288 = vadd.f32 %v2239, %v2287
        %v2289 = vpop.f32.mrf.mxu0
        %v2290 = vadd.f32 %v2241, %v2289
        %2291 = vmatmul.bf16.gmra.mxu0 %v2201
        %v2292 = vpop.f32.mrf.mxu0
        %v2293 = vadd.f32 %v2244, %v2292
        %v2294 = vpop.f32.mrf.mxu0
        %v2295 = vadd.f32 %v2246, %v2294
        %2296 = vmatmul.bf16.gmra.mxu0 %v2204
        %v2297 = vpop.f32.mrf.mxu0
        %v2298 = vadd.f32 %v2249, %v2297
        %v2299 = vpop.f32.mrf.mxu0
        %v2300 = vadd.f32 %v2251, %v2299
        %2301 = vmatmul.bf16.gmra.mxu0 %v2207
        %v2302 = vpop.f32.mrf.mxu0
        %v2303 = vadd.f32 %v2254, %v2302
        %v2304 = vpop.f32.mrf.mxu0
        %v2305 = vadd.f32 %v2256, %v2304
        %2306 = vdwg.mxu0
        %v2307 = vmax.f32 %v2268, 0.0
        %v2308 = vmax.f32 %v2270, 0.0
        %v2309 = vmax.f32 %v2273, 0.0
        %v2310 = vmax.f32 %v2275, 0.0
        %v2311 = vmax.f32 %v2278, 0.0
        %v2312 = vmax.f32 %v2280, 0.0
        %v2313 = vmax.f32 %v2283, 0.0
        %v2314 = vmax.f32 %v2285, 0.0
        %v2315 = vmax.f32 %v2288, 0.0
        %v2316 = vmax.f32 %v2290, 0.0
        %v2317 = vmax.f32 %v2293, 0.0
        %v2318 = vmax.f32 %v2295, 0.0
        %v2319 = vmax.f32 %v2298, 0.0
        %v2320 = vmax.f32 %v2300, 0.0
        %v2321 = vmax.f32 %v2303, 0.0
        %v2322 = vmax.f32 %v2305, 0.0
        %v2323 = vpack.c.bf16 %v2308, %v2307
        %v2324 = vpack.c.bf16 %v2310, %v2309
        %v2325 = vpack.c.bf16 %v2312, %v2311
        %v2326 = vpack.c.bf16 %v2314, %v2313
        %v2327 = vpack.c.bf16 %v2316, %v2315
        %v2328 = vpack.c.bf16 %v2318, %v2317
        %v2329 = vpack.c.bf16 %v2320, %v2319
        %v2330 = vpack.c.bf16 %v2322, %v2321
        %v2331 = vld [vmem:[%s4] sm:$0xf]
        %v2332 = vld [vmem:[%s4 + $0x4] sm:$0xf]
        %v2333 = vld [vmem:[%s5] sm:$0x1]
        %v2335 = vperm.slane %v2333, 0
        %v2339 = vunpack.c.l.b16 %v2331
        %v2340 = vunpack.c.l.b16 %v2332
        %v2341 = vpack.c.b16 %v2340, %v2339
        %v2344 = vsel %vm2184, %v2323, 0
        %v2347 = vsel %vm2184, %v2324, 0
        %v2350 = vsel %vm2184, %v2325, 0
        %v2353 = vsel %vm2184, %v2326, 0
        %v2356 = vsel %vm2184, %v2327, 0
        %v2359 = vsel %vm2184, %v2328, 0
        %v2362 = vsel %vm2184, %v2329, 0
        %v2365 = vsel %vm2184, %v2330, 0
        %2367 = vmatpush.bf16.msra.mxu0 0
        %2368 = vmatpush.bf16.msra.mxu0 0
        %2369 = vmatpush.bf16.msra.mxu0 0
        %2370 = vmatpush.bf16.msra.mxu0 0
        %2371 = vmatpush.bf16.msra.mxu0 0
        %2372 = vmatpush.bf16.msra.mxu0 0
        %2373 = vmatpush.bf16.msra.mxu0 0
        %2374 = vmatpush.bf16.msra.mxu0 %v2341
        %2375 = vmatmul.bf16.gmra.mxu0 %v2344
        %v2376 = vpop.f32.mrf.mxu0
        %v2377 = vadd.f32 %v2335, %v2376
        %v2378 = vpop.f32.mrf.mxu0
        %v2379 = vadd.f32 %v2335, %v2378
        %2380 = vmatmul.bf16.gmra.mxu0 %v2347
        %v2381 = vpop.f32.mrf.mxu0
        %v2382 = vadd.f32 %v2335, %v2381
        %v2383 = vpop.f32.mrf.mxu0
        %v2384 = vadd.f32 %v2335, %v2383
        %2385 = vmatmul.bf16.gmra.mxu0 %v2350
        %v2386 = vpop.f32.mrf.mxu0
        %v2387 = vadd.f32 %v2335, %v2386
        %v2388 = vpop.f32.mrf.mxu0
        %v2389 = vadd.f32 %v2335, %v2388
        %2390 = vmatmul.bf16.gmra.mxu0 %v2353
        %v2391 = vpop.f32.mrf.mxu0
        %v2392 = vadd.f32 %v2335, %v2391
        %v2393 = vpop.f32.mrf.mxu0
        %v2394 = vadd.f32 %v2335, %v2393
        %2395 = vmatmul.bf16.gmra.mxu0 %v2356
        %v2396 = vpop.f32.mrf.mxu0
        %v2397 = vadd.f32 %v2335, %v2396
        %v2398 = vpop.f32.mrf.mxu0
        %v2399 = vadd.f32 %v2335, %v2398
        %2400 = vmatmul.bf16.gmra.mxu0 %v2359
        %v2401 = vpop.f32.mrf.mxu0
        %v2402 = vadd.f32 %v2335, %v2401
        %v2403 = vpop.f32.mrf.mxu0
        %v2404 = vadd.f32 %v2335, %v2403
        %2405 = vmatmul.bf16.gmra.mxu0 %v2362
        %v2406 = vpop.f32.mrf.mxu0
        %v2407 = vadd.f32 %v2335, %v2406
        %v2408 = vpop.f32.mrf.mxu0
        %v2409 = vadd.f32 %v2335, %v2408
        %2410 = vmatmul.bf16.gmra.mxu0 %v2365
        %v2411 = vpop.f32.mrf.mxu0
        %v2412 = vadd.f32 %v2335, %v2411
        %v2413 = vpop.f32.mrf.mxu0
        %v2414 = vadd.f32 %v2335, %v2413
        %2415 = vdwg.mxu0
        %2416 = vxpose.xlu0.b32.start [1/16] %v2377, 128
        %2417 = vxpose.xlu0.b32.cont [2/16] %v2379, 128
        %2418 = vxpose.xlu0.b32.cont [3/16] %v2382, 128
        %2419 = vxpose.xlu0.b32.cont [4/16] %v2384, 128
        %2420 = vxpose.xlu0.b32.cont [5/16] %v2387, 128
        %2421 = vxpose.xlu0.b32.cont [6/16] %v2389, 128
        %2422 = vxpose.xlu0.b32.cont [7/16] %v2392, 128
        %2423 = vxpose.xlu0.b32.cont [8/16] %v2394, 128
        %2424 = vxpose.xlu0.b32.cont [9/16] %v2397, 128
        %2425 = vxpose.xlu0.b32.cont [10/16] %v2399, 128
        %2426 = vxpose.xlu0.b32.cont [11/16] %v2402, 128
        %2427 = vxpose.xlu0.b32.cont [12/16] %v2404, 128
        %2428 = vxpose.xlu0.b32.cont [13/16] %v2407, 128
        %2429 = vxpose.xlu0.b32.cont [14/16] %v2409, 128
        %2430 = vxpose.xlu0.b32.cont [15/16] %v2412, 128
        %2431 = vxpose.xlu0.b32.end [16/16] %v2414, 128
        %v2432 = vpop.trf.xlu0
        %v2433 = vpop.trf.xlu0
        %v2434 = vpop.trf.xlu0
        %v2435 = vpop.trf.xlu0
        %v2436 = vpop.trf.xlu0
        %v2437 = vpop.trf.xlu0
        %v2438 = vpop.trf.xlu0
        %v2439 = vpop.trf.xlu0
        %v2440 = vpop.trf.xlu0
        %v2441 = vpop.trf.xlu0
        %v2442 = vpop.trf.xlu0
        %v2443 = vpop.trf.xlu0
        %v2444 = vpop.trf.xlu0
        %v2445 = vpop.trf.xlu0
        %v2446 = vpop.trf.xlu0
        %v2447 = vpop.trf.xlu0
        %v2448 = vpack.c.bf16 %v2432, %v2432
        %vm2449 = vcmask 1041408
        %vm2450 = vsmask.f32 1280
        %vm2451 = vmand %vm2449, %vm2450
        %v2452 = vld [vmem:[%s404] sm:$0x3]
        %v2453 = vsel %vm2451, %v2448, %v2452
        %2454 = vst [vmem:[%s404] sm:$0x3] %v2453
        %v2455 = vmin.f32 %v2435, 4.1351666
        %v2456 = vmin.f32 %v2436, 4.1351666
        %v2457 = vlaneseq
        %v2458 = vand.u32 %v2457, 127
        %v2459 = vcvt.s32.f32 %v2458
        %v2460 = vlaneseq
        %v2461 = vshrl.u32 %v2460, 7
        %v2462 = vadd.f32 %v2459, 0.5
        %v2463 = vmul.f32 %v2462, 0.0625
        %v2464 = vfloor.f32 %v2463
        %v2465 = vmul.f32 %v2464, 16.0
        %v2466 = vsub.f32 %v2459, %v2465
        %s2467 = smul.u32 %s24, 8
        %s2468 = scvt.s32.f32 %s2467
        %v2469 = vstv %s2468
        %v2470 = vadd.f32 %v2464, %v2469
        %v2471 = vmul.f32 %v2466, 16.0
        %v2472 = vmul.f32 %v2470, 16.0
        %vm2473 = vcmp.eq.s32.totalorder %v2461, 0
        %v2474 = vsel %vm2473, 45.254833, 22.627417
        %v2475 = vsel %vm2473, 22.627417, 45.254833
        %vm2476 = vcmp.eq.s32.totalorder %v2461, 1
        %v2477 = vsel %vm2476, 32.0, %v2474
        %v2478 = vsel %vm2476, 32.0, %v2475
        %v2479 = vmul.f32 %v2433, %v2477
        %v2480 = vadd.f32 %v2479, %v2471
        %v2481 = vmul.f32 %v2434, %v2478
        %v2482 = vadd.f32 %v2481, %v2472
        %v2483 = vmul.f32 %v2455, 1.442695
        %v2484 = vpow.pop %v2483
        %v2485 = vmul.f32 %v2484, %v2477
        %v2486 = vmul.f32 %v2456, 1.442695
        %v2487 = vpow.pop %v2486
        %v2488 = vmul.f32 %v2487, %v2478
        %v2489 = vmul.f32 %v2485, 0.5
        %v2490 = vsub.f32 %v2480, %v2489
        %v2491 = vmax.f32 %v2490, 0.0
        %v2492 = vmin.f32 %v2491, 256.0
        %v2493 = vmul.f32 %v2488, 0.5
        %v2494 = vsub.f32 %v2482, %v2493
        %v2495 = vmax.f32 %v2494, 0.0
        %v2496 = vmin.f32 %v2495, 256.0
        %v2497 = vadd.f32 %v2480, %v2489
        %v2498 = vmax.f32 %v2497, 0.0
        %v2499 = vmin.f32 %v2498, 256.0
        %v2500 = vadd.f32 %v2482, %v2493
        %v2501 = vmax.f32 %v2500, 0.0
        %v2502 = vmin.f32 %v2501, 256.0
        %v2504 = vrot.slane %v2496, 5
        %v2507 = vrot.slane %v2499, 2
        %v2510 = vrot.slane %v2502, 7
        %vm2512 = vcmask 1042432
        %v2513 = vsel %vm2512, %v2492, %v2504
        %vm2514 = vcmask 1045504
        %v2515 = vsel %vm2514, %v2513, %v2507
        %vm2516 = vcmask 1040384
        %v2517 = vsel %vm2516, %v2507, %v2510
        %2518 = vst [vmem:[%s360] sm:$0xff] %v2515
        %2519 = vst [vmem:[%s360 + $0x8] sm:$0xf] %v2517
        %p2520 = scmp.lt.s32.totalorder %s23, 1
        %s2521 = scalar_select %p2520, %s23, 1
        %p2522 = scmp.lt.s32.totalorder %s24, 1
        %s2523 = scalar_select %p2522, %s24, 1
        %s2524 = smul.addr %s2521, 2
        %s2525 = sadd.s32 %s2523, %s2524
        %s2526 = smul.addr %s2525, 2
        %s2527 = scalar_lea.vmem %s6, %s2526
        %s2528 = sand.u32 %s213, 1
        %s2529 = sand.u32 %s213, 1
        %s2530 = smul.addr %s2529, 16
        %s2531 = scalar_lea.vmem [#allocation4], %s2530
        // Predicated region
        $region45: #{tpu_custom_call.1} parent=43 // pred_check
          %p2532 = pneg %p195
        $region46: #{tpu_custom_call.1} parent=43 // pred_check_branch
          %2534 = sbr.rel (%p2532) target = $region48
        $region47: #{tpu_custom_call.1} parent=43 // pred_region
          _
        $region48: #{tpu_custom_call.1} parent=43 // pred_fallthru
          _
        // Predicated region
        $region49: #{tpu_custom_call.1} parent=43 // pred_check
          %p2535 = pneg %p223
        $region50: #{tpu_custom_call.1} parent=43 // pred_check_branch
          %2537 = sbr.rel (%p2535) target = $region52
        $region51: #{tpu_custom_call.1} parent=43 // pred_region
          %s2538 = smul.addr %s23, 4
          %s2539 = sadd.s32 %s24, %s2538
          %s2540 = smul.addr %s2539, 8
          %s2541 = scalar_lea.vmem %s7, %s2540
          // Predicated region
          $region53: #{tpu_custom_call.1} parent=51 // pred_check
            _
          $region54: #{tpu_custom_call.1} parent=51 // pred_check_branch
            %2543 = sbr.rel (0) target = $region56
          $region55: #{tpu_custom_call.1} parent=51 // pred_region
            // Predicated region
            $region57: #{tpu_custom_call.1} parent=55 // pred_check
              _
            $region58: #{tpu_custom_call.1} parent=55 // pred_check_branch
              %2545 = sbr.rel (0) target = $region60
            $region59: #{tpu_custom_call.1} parent=55 // pred_region
              // Predicated region
              $region72: #{tpu_custom_call.1} parent=59 // pred_check
                _
              $region73: #{tpu_custom_call.1} parent=59 // pred_check_branch
                %2563 = sbr.rel (0) target = $region75
              $region74: #{tpu_custom_call.1} parent=59 // pred_region
                loop: start=0, step=1, limit=1
                $region76: #{tpu_custom_call.1} parent=74 // loop_pre_header
                  _
                $region77: #{tpu_custom_call.1} parent=74 // loop_header
                  %s2565 = sphi 0, %s2569
                  %p2566 = scmp.ge.s32.totalorder %s2565, 1
                  %s2570 = sphi %s2531, %s2531
                  %s2571 = sphi %s2541, %s2541
                $region78: #{tpu_custom_call.1} parent=74 // loop_header_branch
                  %2568 = sbr.rel (%p2566) target = $region82
                $region79: #{tpu_custom_call.1} parent=74 // loop_body
                  %v2572 = vld [vmem:[%s2570] sm:$0xff]
                  %2573 = vst [vmem:[%s2571] sm:$0xff] %v2572
                  %v2574 = vld [vmem:[%s2570 + $0x8] sm:$0xff]
                  %2575 = vst [vmem:[%s2571 + $0x10] sm:$0xff] %v2574
                $region80: #{tpu_custom_call.1} parent=74 // loop_footer
                  %s2569 = sadd.s32 1, %s2565
                $region81: #{tpu_custom_call.1} parent=74 // loop_footer_branch
                  %2564 = sbr.rel target = $region77
                $region82: #{tpu_custom_call.1} parent=74 // loop_exit
                  _
              $region75: #{tpu_custom_call.1} parent=59 // pred_fallthru
                _
              // Predicated region
              $region83: #{tpu_custom_call.1} parent=59 // pred_check
                _
              $region84: #{tpu_custom_call.1} parent=59 // pred_check_branch
                %2577 = sbr.rel target = $region86
              $region85: #{tpu_custom_call.1} parent=59 // pred_region
                _
              $region86: #{tpu_custom_call.1} parent=59 // pred_fallthru
                _
            $region60: #{tpu_custom_call.1} parent=55 // pred_fallthru
              _
            // Predicated region
            $region61: #{tpu_custom_call.1} parent=55 // pred_check
              _
            $region62: #{tpu_custom_call.1} parent=55 // pred_check_branch
              %2547 = sbr.rel target = $region64
            $region63: #{tpu_custom_call.1} parent=55 // pred_region
              %s2549 = ssub.s32 256, 1
              loop: start=0, step=1, limit=1
              $region65: #{tpu_custom_call.1} parent=63 // loop_pre_header
                _
              $region66: #{tpu_custom_call.1} parent=63 // loop_header
                %s2551 = sphi 0, %s2555
                %p2552 = scmp.ge.s32.totalorder %s2551, 1
                %s2556 = sphi %s2531, %s2531
                %s2557 = sphi %s2541, %s2541
              $region67: #{tpu_custom_call.1} parent=63 // loop_header_branch
                %2554 = sbr.rel (%p2552) target = $region71
              $region68: #{tpu_custom_call.1} parent=63 // loop_body
                %v2558 = vld [vmem:[%s2556] sm:%s2549]
                %2559 = vst [vmem:[%s2557] sm:%s2549] %v2558
                %v2560 = vld [vmem:[%s2556 + $0x8] sm:%s2549]
                %2561 = vst [vmem:[%s2557 + $0x10] sm:%s2549] %v2560
              $region69: #{tpu_custom_call.1} parent=63 // loop_footer
                %s2555 = sadd.s32 1, %s2551
              $region70: #{tpu_custom_call.1} parent=63 // loop_footer_branch
                %2550 = sbr.rel target = $region66
              $region71: #{tpu_custom_call.1} parent=63 // loop_exit
                _
            $region64: #{tpu_custom_call.1} parent=55 // pred_fallthru
              _
          $region56: #{tpu_custom_call.1} parent=51 // pred_fallthru
            _
          %2578 = vnop
        $region52: #{tpu_custom_call.1} parent=43 // pred_fallthru
          _
      $region44: #{tpu_custom_call.1} parent=5 // pred_fallthru
        _
      %p2579 = scmp.le.s32.totalorder 2, %s14
      // Predicated region
      $region87: #{tpu_custom_call.1} parent=5 // pred_check
        %p2580 = pneg %p2579
      $region88: #{tpu_custom_call.1} parent=5 // pred_check_branch
        %2582 = sbr.rel (%p2580) target = $region90
      $region89: #{tpu_custom_call.1} parent=5 // pred_region
        %s2583 = ssub.s32 %s14, 2
        // Predicated region
        $region91: #{tpu_custom_call.1} parent=89 // pred_check
          %p2584 = pneg %p201
        $region92: #{tpu_custom_call.1} parent=89 // pred_check_branch
          %2586 = sbr.rel (%p2584) target = $region94
        $region93: #{tpu_custom_call.1} parent=89 // pred_region
          %p2587 = scmp.lt.s32.totalorder %s25, 1
          %s2588 = scalar_select %p2587, %s25, 1
          %p2589 = scmp.lt.s32.totalorder %s26, 1
          %s2590 = scalar_select %p2589, %s26, 1
          %s2591 = smul.addr %s2588, 2
          %s2592 = sadd.s32 %s2590, %s2591
          %s2593 = smul.addr %s2592, 2
          %s2594 = scalar_lea.vmem %s6, %s2593
        $region94: #{tpu_custom_call.1} parent=89 // pred_fallthru
          _
        // Predicated region
        $region95: #{tpu_custom_call.1} parent=89 // pred_check
          %p2595 = pneg %p229
        $region96: #{tpu_custom_call.1} parent=89 // pred_check_branch
          %2597 = sbr.rel (%p2595) target = $region98
        $region97: #{tpu_custom_call.1} parent=89 // pred_region
          %s2598 = sand.u32 %s214, 1
          %s2599 = sand.u32 %s214, 1
          %s2600 = smul.addr %s2599, 16
          %s2601 = scalar_lea.vmem [#allocation4], %s2600
        $region98: #{tpu_custom_call.1} parent=89 // pred_fallthru
          _
      $region90: #{tpu_custom_call.1} parent=5 // pred_fallthru
        _
    $region6: #{tpu_custom_call.1} parent=1 // loop_footer
      %s18 = sadd.s32 1, %s14
    $region7: #{tpu_custom_call.1} parent=1 // loop_footer_branch
      %13 = sbr.rel target = $region3
    $region8: #{tpu_custom_call.1} parent=1 // loop_exit
      _

</llo_original>
